<compile_context>
chip_gen: v6e
topology: v6e:2x2x1
jax: 0.10.0
libtpu: 0.0.40
codegen_flags: <defaults>
</compile_context>

<pallas_src>
import math

import jax
import jax.numpy as jnp
from jax import lax
from jax.experimental import pallas as pl
from jax.experimental.pallas import tpu as pltpu


def _mhca_kernel(num_heads, head_dim, compute_dtype):
    H, hd = num_heads, head_dim
    dt = compute_dtype

    def kernel(q_in_ref, k_in_ref, v_in_ref,
               wq_ref, bq_ref, wk_ref, bk_ref, wv_ref, bv_ref,
               wo_ref, bo_ref,
               o_ref,
               kh_s, vh_s, attn_s):
        qi = pl.program_id(1)

        # K/V projections: once per batch element, cached head-major in VMEM
        # scratch and reused for every query tile of this batch element.
        @pl.when(qi == 0)
        def _():
            key_mat = k_in_ref[0]      # (S, E)
            val_mat = v_in_ref[0]      # (S, E)
            for h in range(H):         # static unroll; (S,E)@(E,hd) per head
                kh = jnp.dot(key_mat, wk_ref[h],
                             preferred_element_type=jnp.float32) + bk_ref[h]
                vh = jnp.dot(val_mat, wv_ref[h],
                             preferred_element_type=jnp.float32) + bv_ref[h]
                kh_s[h] = kh.astype(dt)
                vh_s[h] = vh.astype(dt)

        query = q_in_ref[0]            # (tq, E)

        for h in range(H):
            # Q projection for head h; `scaling` was folded into wq/bq.
            qh = (jnp.dot(query, wq_ref[h],
                          preferred_element_type=jnp.float32)
                  + bq_ref[h]).astype(dt)                        # (tq, hd)

            # scores = qh @ kh^T, contracting the last dims of both operands
            # (no materialized transpose of kh).
            s = lax.dot_general(qh, kh_s[h],
                                (((1,), (1,)), ((), ())),
                                preferred_element_type=jnp.float32)  # (tq, S)

            # Softmax over src dim in f32 with deferred normalization.
            m = jnp.max(s, axis=-1, keepdims=True)
            p = jnp.exp(s - m)
            l = jnp.sum(p, axis=-1, keepdims=True)
            # TODO(synk): dropout_module is identity here (dropout=0.0 / eval).

            pv = jnp.dot(p.astype(dt), vh_s[h],
                         preferred_element_type=jnp.float32)     # (tq, hd)
            # Fold 1/l into the small PV result (tq*hd mults, EUP reciprocal)
            # instead of dividing the full (tq, S) probability matrix.
            attn_h = pv * pl.reciprocal(l, approx=True)

            lo = h * hd
            attn_s[:, lo:lo + hd] = attn_h.astype(dt)

        # Single full-width output projection from the resident accumulator.
        out = jnp.dot(attn_s[...], wo_ref[...],
                      preferred_element_type=jnp.float32) + bo_ref[...]
        o_ref[0] = out.astype(o_ref.dtype)

    return kernel


def prepare_mhca_params(params, num_heads, dtype=jnp.float32):
    """One-time parameter prep (model-load time, not per call).

    Torch Linear weights are (out, in); we pre-transpose to (in, out), split
    the output axis into heads -> (H, in, hd), and fold `scaling` into the
    q-projection weight/bias.
    """
    E = params["q_w"].shape[0]
    hd = E // num_heads
    scaling = hd ** (-0.5)

    def per_head_in(w):   # (out, in) -> (H, in, hd)
        return jnp.transpose(w.T.reshape(E, num_heads, hd), (1, 0, 2))

    return {
        "wq": (per_head_in(params["q_w"]) * scaling).astype(dtype),
        "bq": (params["q_b"] * scaling).reshape(num_heads, 1, hd).astype(dtype),
        "wk": per_head_in(params["k_w"]).astype(dtype),
        "bk": params["k_b"].reshape(num_heads, 1, hd).astype(dtype),
        "wv": per_head_in(params["v_w"]).astype(dtype),
        "bv": params["v_b"].reshape(num_heads, 1, hd).astype(dtype),
        "wo": params["o_w"].T.astype(dtype),                 # (E_in, E_out)
        "bo": params["o_b"].reshape(1, E).astype(dtype),
    }


def _choose_tq(T):
    """Query-tile length: full T if small, else a multiple-of-8 divisor."""
    if T <= 256:
        return T
    for cand in (256, 128, 64, 32, 16, 8):
        if T % cand == 0:
            return cand
    return T


def multihead_cross_attention(query, key, value, prepared, num_heads,
                              tq=None, vmem_limit_bytes=None):
    """query: (B, T, E), key/value: (B, S, E); `prepared` from
    prepare_mhca_params."""
    B, T, E = query.shape
    _, S, _ = value.shape
    hd = E // num_heads
    dt = query.dtype

    if tq is None:
        tq = _choose_tq(T)
    assert T % tq == 0 and (tq == T or tq % 8 == 0)
    num_q_tiles = T // tq

    def const3(b, qi):
        return (0, 0, 0)

    def const2(b, qi):
        return (0, 0)

    w_spec = pl.BlockSpec((num_heads, E, hd), const3)
    b_spec = pl.BlockSpec((num_heads, 1, hd), const3)

    cp = dict(dimension_semantics=("parallel", "arbitrary"))
    if vmem_limit_bytes is not None:
        # For realistic E/S sizes (esp. v7x 64 MiB VMEM, v5e 16 MiB scoped
        # default) size this explicitly; tiny demo shapes fit the default.
        cp["vmem_limit_bytes"] = vmem_limit_bytes

    out = pl.pallas_call(
        _mhca_kernel(num_heads, hd, dt),
        out_shape=jax.ShapeDtypeStruct((B, T, E), dt),
        grid=(B, num_q_tiles),
        in_specs=[
            pl.BlockSpec((1, tq, E), lambda b, qi: (b, qi, 0)),   # query tile
            pl.BlockSpec((1, S, E), lambda b, qi: (b, 0, 0)),     # key (resident over qi)
            pl.BlockSpec((1, S, E), lambda b, qi: (b, 0, 0)),     # value (resident over qi)
            w_spec, b_spec,                                       # q_proj
            w_spec, b_spec,                                       # k_proj
            w_spec, b_spec,                                       # v_proj
            pl.BlockSpec((E, E), const2),                         # out_proj W
            pl.BlockSpec((1, E), const2),                         # out_proj b
        ],
        out_specs=pl.BlockSpec((1, tq, E), lambda b, qi: (b, qi, 0)),
        scratch_shapes=[
            pltpu.VMEM((num_heads, S, hd), dt),   # projected K, head-major
            pltpu.VMEM((num_heads, S, hd), dt),   # projected V, head-major
            pltpu.VMEM((tq, E), dt),              # per-tile attn accumulator
        ],
        compiler_params=pltpu.CompilerParams(**cp),
    )(query.astype(dt), key.astype(dt), value.astype(dt),
      prepared["wq"], prepared["bq"], prepared["wk"], prepared["bk"],
      prepared["wv"], prepared["bv"], prepared["wo"], prepared["bo"])
    return out


def _reference(query, key, value, params, num_heads):
    """Pure-JAX reference mirroring the PyTorch forward (raw torch params)."""
    B, T, E = query.shape
    _, S, _ = value.shape
    hd = E // num_heads
    scaling = hd ** (-0.5)

    def lin(x, w, b):
        return jnp.einsum("bld,od->blo", x, w) + b

    q = lin(query, params["q_w"], params["q_b"]) * scaling
    k = lin(key, params["k_w"], params["k_b"])
    v = lin(value, params["v_w"], params["v_b"])

    q = q.reshape(B, T, num_heads, hd).transpose(0, 2, 1, 3).reshape(B * num_heads, T, hd)
    k = k.reshape(B, S, num_heads, hd).transpose(0, 2, 1, 3).reshape(B * num_heads, S, hd)
    v = v.reshape(B, S, num_heads, hd).transpose(0, 2, 1, 3).reshape(B * num_heads, S, hd)

    w = jnp.einsum("btd,bsd->bts", q, k)
    w = jax.nn.softmax(w.astype(jnp.float32), axis=-1).astype(q.dtype)
    attn = jnp.einsum("bts,bsd->btd", w, v)
    attn = attn.reshape(B, num_heads, T, hd).transpose(0, 2, 1, 3).reshape(B, T, E)
    return jnp.einsum("btd,od->bto", attn, params["o_w"]) + params["o_b"]


if __name__ == "__main__":
    # Small shapes: batch=2, tgt_len=8, src_len=8, embed_dim=32, heads=4.
    B, T, S, E, H = 2, 8, 8, 32, 4

    key0 = jax.random.PRNGKey(0)
    keys = jax.random.split(key0, 16)

    def xavier(k, shape, gain):
        fan_in, fan_out = shape[1], shape[0]
        a = gain * math.sqrt(6.0 / (fan_in + fan_out))
        return jax.random.uniform(k, shape, jnp.float32, -a, a)

    g = 1.0 / math.sqrt(2.0)
    params = {
        "q_w": xavier(keys[0], (E, E), g),
        "q_b": jax.random.normal(keys[1], (E,), jnp.float32) * 0.02,
        "k_w": xavier(keys[2], (E, E), g),
        "k_b": jax.random.normal(keys[3], (E,), jnp.float32) * 0.02,
        "v_w": xavier(keys[4], (E, E), g),
        "v_b": jax.random.normal(keys[5], (E,), jnp.float32) * 0.02,
        "o_w": xavier(keys[6], (E, E), 1.0),
        "o_b": jnp.zeros((E,), jnp.float32),
    }

    query = jax.random.normal(keys[7], (B, T, E), jnp.float32)
    key_in = jax.random.normal(keys[8], (B, S, E), jnp.float32)
    value = jax.random.normal(keys[9], (B, S, E), jnp.float32)

    prepared = prepare_mhca_params(params, H, dtype=query.dtype)

    out = multihead_cross_attention(query, key_in, value, prepared, H)
    out = jax.block_until_ready(out)

    ref = _reference(query, key_in, value, params, H)
    assert out.shape == (B, T, E)
    # Tolerance covers the approx (EUP) reciprocal in the softmax denominator.
    assert jnp.allclose(out, ref, atol=2e-3, rtol=2e-3), "mismatch vs reference"

    print("KERNEL_OK")
</pallas_src>

<mosaic_0001>
module attributes {stable_mosaic.version = 11 : i64} {
  func.func @kernel(%arg0: i32, %arg1: i32, %arg2: memref<1x8x32xf32, #tpu.memory_space<vmem>>, %arg3: memref<1x8x32xf32, #tpu.memory_space<vmem>>, %arg4: memref<1x8x32xf32, #tpu.memory_space<vmem>>, %arg5: memref<4x32x8xf32, #tpu.memory_space<vmem>>, %arg6: memref<4x1x8xf32, #tpu.memory_space<vmem>>, %arg7: memref<4x32x8xf32, #tpu.memory_space<vmem>>, %arg8: memref<4x1x8xf32, #tpu.memory_space<vmem>>, %arg9: memref<4x32x8xf32, #tpu.memory_space<vmem>>, %arg10: memref<4x1x8xf32, #tpu.memory_space<vmem>>, %arg11: memref<32x32xf32, #tpu.memory_space<vmem>>, %arg12: memref<1x32xf32, #tpu.memory_space<vmem>>, %arg13: memref<1x8x32xf32, #tpu.memory_space<vmem>>, %arg14: memref<4x8x8xf32, #tpu.memory_space<vmem>>, %arg15: memref<4x8x8xf32, #tpu.memory_space<vmem>>, %arg16: memref<8x32xf32, #tpu.memory_space<vmem>>) attributes {dimension_semantics = [#tpu.dimension_semantics<parallel>, #tpu.dimension_semantics<arbitrary>], iteration_bounds = array<i64: 2, 1>, scalar_prefetch = 0 : i64, scratch_operands = 3 : i64, tpu.core_type = #tpu.core_type<tc>, window_params = [{transform_indices = @transform_0, window_bounds = array<i64: 1, 8, 32>}, {transform_indices = @transform_1, window_bounds = array<i64: 1, 8, 32>}, {transform_indices = @transform_2, window_bounds = array<i64: 1, 8, 32>}, {pipeline_mode = #tpu.pipeline_mode<synchronous>, transform_indices = @transform_3, window_bounds = array<i64: 4, 32, 8>}, {pipeline_mode = #tpu.pipeline_mode<synchronous>, transform_indices = @transform_4, window_bounds = array<i64: 4, 1, 8>}, {pipeline_mode = #tpu.pipeline_mode<synchronous>, transform_indices = @transform_5, window_bounds = array<i64: 4, 32, 8>}, {pipeline_mode = #tpu.pipeline_mode<synchronous>, transform_indices = @transform_6, window_bounds = array<i64: 4, 1, 8>}, {pipeline_mode = #tpu.pipeline_mode<synchronous>, transform_indices = @transform_7, window_bounds = array<i64: 4, 32, 8>}, {pipeline_mode = #tpu.pipeline_mode<synchronous>, transform_indices = @transform_8, window_bounds = array<i64: 4, 1, 8>}, {pipeline_mode = #tpu.pipeline_mode<synchronous>, transform_indices = @transform_9, window_bounds = array<i64: 32, 32>}, {pipeline_mode = #tpu.pipeline_mode<synchronous>, transform_indices = @transform_10, window_bounds = array<i64: 1, 32>}, {transform_indices = @transform_11, window_bounds = array<i64: 1, 8, 32>}]} {
    %c0_i32 = arith.constant 0 : i32
    %0 = arith.cmpi eq, %arg1, %c0_i32 : i32
    %1 = arith.extui %0 : i1 to i32
    %c0_i32_0 = arith.constant 0 : i32
    %2 = arith.cmpi ne, %1, %c0_i32_0 : i32
    scf.if %2 {
      %c0_82 = arith.constant 0 : index
      %c0_83 = arith.constant 0 : index
      %c0_84 = arith.constant 0 : index
      %110 = vector.load %arg3[%c0_82, %c0_83, %c0_84] : memref<1x8x32xf32, #tpu.memory_space<vmem>>, vector<1x8x32xf32>
      %111 = vector.shape_cast %110 : vector<1x8x32xf32> to vector<8x32xf32>
      %c0_85 = arith.constant 0 : index
      %c0_86 = arith.constant 0 : index
      %c0_87 = arith.constant 0 : index
      %112 = vector.load %arg4[%c0_85, %c0_86, %c0_87] : memref<1x8x32xf32, #tpu.memory_space<vmem>>, vector<1x8x32xf32>
      %113 = vector.shape_cast %112 : vector<1x8x32xf32> to vector<8x32xf32>
      %c0_88 = arith.constant 0 : index
      %c0_89 = arith.constant 0 : index
      %c0_90 = arith.constant 0 : index
      %114 = vector.load %arg7[%c0_88, %c0_89, %c0_90] : memref<4x32x8xf32, #tpu.memory_space<vmem>>, vector<1x32x8xf32>
      %115 = vector.shape_cast %114 : vector<1x32x8xf32> to vector<32x8xf32>
      %cst_91 = arith.constant dense<0.000000e+00> : vector<8x8xf32>
      %116 = tpu.matmul %111, %115, %cst_91 {dimension_numbers = #tpu.dot_dimension_numbers<[1], [0], [0], [1], [0, 0, 1, 1], [], []>} : vector<8x32xf32>, vector<32x8xf32>, vector<8x8xf32> -> vector<8x8xf32>
      %c0_92 = arith.constant 0 : index
      %c0_93 = arith.constant 0 : index
      %c0_94 = arith.constant 0 : index
      %117 = vector.load %arg8[%c0_92, %c0_93, %c0_94] : memref<4x1x8xf32, #tpu.memory_space<vmem>>, vector<1x1x8xf32>
      %118 = vector.shape_cast %117 : vector<1x1x8xf32> to vector<1x8xf32>
      %119 = vector.broadcast %118 : vector<1x8xf32> to vector<8x8xf32>
      %120 = arith.addf %116, %119 : vector<8x8xf32>
      %c0_95 = arith.constant 0 : index
      %c0_96 = arith.constant 0 : index
      %c0_97 = arith.constant 0 : index
      %121 = vector.load %arg9[%c0_95, %c0_96, %c0_97] : memref<4x32x8xf32, #tpu.memory_space<vmem>>, vector<1x32x8xf32>
      %122 = vector.shape_cast %121 : vector<1x32x8xf32> to vector<32x8xf32>
      %cst_98 = arith.constant dense<0.000000e+00> : vector<8x8xf32>
      %123 = tpu.matmul %113, %122, %cst_98 {dimension_numbers = #tpu.dot_dimension_numbers<[1], [0], [0], [1], [0, 0, 1, 1], [], []>} : vector<8x32xf32>, vector<32x8xf32>, vector<8x8xf32> -> vector<8x8xf32>
      %c0_99 = arith.constant 0 : index
      %c0_100 = arith.constant 0 : index
      %c0_101 = arith.constant 0 : index
      %124 = vector.load %arg10[%c0_99, %c0_100, %c0_101] : memref<4x1x8xf32, #tpu.memory_space<vmem>>, vector<1x1x8xf32>
      %125 = vector.shape_cast %124 : vector<1x1x8xf32> to vector<1x8xf32>
      %126 = vector.broadcast %125 : vector<1x8xf32> to vector<8x8xf32>
      %127 = arith.addf %123, %126 : vector<8x8xf32>
      %c0_102 = arith.constant 0 : index
      %c0_103 = arith.constant 0 : index
      %c0_104 = arith.constant 0 : index
      %128 = vector.load %arg14[%c0_102, %c0_103, %c0_104] : memref<4x8x8xf32, #tpu.memory_space<vmem>>, vector<1x8x8xf32>
      %129 = vector.shape_cast %128 : vector<1x8x8xf32> to vector<8x8xf32>
      %130 = vector.shape_cast %120 : vector<8x8xf32> to vector<1x8x8xf32>
      tpu.vector_store %arg14[%c0_102, %c0_103, %c0_104], %130 {strides = array<i32>} : memref<4x8x8xf32, #tpu.memory_space<vmem>>, vector<1x8x8xf32>,
      %c0_105 = arith.constant 0 : index
      %c0_106 = arith.constant 0 : index
      %c0_107 = arith.constant 0 : index
      %131 = vector.load %arg15[%c0_105, %c0_106, %c0_107] : memref<4x8x8xf32, #tpu.memory_space<vmem>>, vector<1x8x8xf32>
      %132 = vector.shape_cast %131 : vector<1x8x8xf32> to vector<8x8xf32>
      %133 = vector.shape_cast %127 : vector<8x8xf32> to vector<1x8x8xf32>
      tpu.vector_store %arg15[%c0_105, %c0_106, %c0_107], %133 {strides = array<i32>} : memref<4x8x8xf32, #tpu.memory_space<vmem>>, vector<1x8x8xf32>,
      %c1_108 = arith.constant 1 : index
      %c0_109 = arith.constant 0 : index
      %c0_110 = arith.constant 0 : index
      %134 = vector.load %arg7[%c1_108, %c0_109, %c0_110] : memref<4x32x8xf32, #tpu.memory_space<vmem>>, vector<1x32x8xf32>
      %135 = vector.shape_cast %134 : vector<1x32x8xf32> to vector<32x8xf32>
      %cst_111 = arith.constant dense<0.000000e+00> : vector<8x8xf32>
      %136 = tpu.matmul %111, %135, %cst_111 {dimension_numbers = #tpu.dot_dimension_numbers<[1], [0], [0], [1], [0, 0, 1, 1], [], []>} : vector<8x32xf32>, vector<32x8xf32>, vector<8x8xf32> -> vector<8x8xf32>
      %c1_112 = arith.constant 1 : index
      %c0_113 = arith.constant 0 : index
      %c0_114 = arith.constant 0 : index
      %137 = vector.load %arg8[%c1_112, %c0_113, %c0_114] : memref<4x1x8xf32, #tpu.memory_space<vmem>>, vector<1x1x8xf32>
      %138 = vector.shape_cast %137 : vector<1x1x8xf32> to vector<1x8xf32>
      %139 = vector.broadcast %138 : vector<1x8xf32> to vector<8x8xf32>
      %140 = arith.addf %136, %139 : vector<8x8xf32>
      %c1_115 = arith.constant 1 : index
      %c0_116 = arith.constant 0 : index
      %c0_117 = arith.constant 0 : index
      %141 = vector.load %arg9[%c1_115, %c0_116, %c0_117] : memref<4x32x8xf32, #tpu.memory_space<vmem>>, vector<1x32x8xf32>
      %142 = vector.shape_cast %141 : vector<1x32x8xf32> to vector<32x8xf32>
      %cst_118 = arith.constant dense<0.000000e+00> : vector<8x8xf32>
      %143 = tpu.matmul %113, %142, %cst_118 {dimension_numbers = #tpu.dot_dimension_numbers<[1], [0], [0], [1], [0, 0, 1, 1], [], []>} : vector<8x32xf32>, vector<32x8xf32>, vector<8x8xf32> -> vector<8x8xf32>
      %c1_119 = arith.constant 1 : index
      %c0_120 = arith.constant 0 : index
      %c0_121 = arith.constant 0 : index
      %144 = vector.load %arg10[%c1_119, %c0_120, %c0_121] : memref<4x1x8xf32, #tpu.memory_space<vmem>>, vector<1x1x8xf32>
      %145 = vector.shape_cast %144 : vector<1x1x8xf32> to vector<1x8xf32>
      %146 = vector.broadcast %145 : vector<1x8xf32> to vector<8x8xf32>
      %147 = arith.addf %143, %146 : vector<8x8xf32>
      %c1_122 = arith.constant 1 : index
      %c0_123 = arith.constant 0 : index
      %c0_124 = arith.constant 0 : index
      %148 = vector.load %arg14[%c1_122, %c0_123, %c0_124] : memref<4x8x8xf32, #tpu.memory_space<vmem>>, vector<1x8x8xf32>
      %149 = vector.shape_cast %148 : vector<1x8x8xf32> to vector<8x8xf32>
      %150 = vector.shape_cast %140 : vector<8x8xf32> to vector<1x8x8xf32>
      tpu.vector_store %arg14[%c1_122, %c0_123, %c0_124], %150 {strides = array<i32>} : memref<4x8x8xf32, #tpu.memory_space<vmem>>, vector<1x8x8xf32>,
      %c1_125 = arith.constant 1 : index
      %c0_126 = arith.constant 0 : index
      %c0_127 = arith.constant 0 : index
      %151 = vector.load %arg15[%c1_125, %c0_126, %c0_127] : memref<4x8x8xf32, #tpu.memory_space<vmem>>, vector<1x8x8xf32>
      %152 = vector.shape_cast %151 : vector<1x8x8xf32> to vector<8x8xf32>
      %153 = vector.shape_cast %147 : vector<8x8xf32> to vector<1x8x8xf32>
      tpu.vector_store %arg15[%c1_125, %c0_126, %c0_127], %153 {strides = array<i32>} : memref<4x8x8xf32, #tpu.memory_space<vmem>>, vector<1x8x8xf32>,
      %c2_128 = arith.constant 2 : index
      %c0_129 = arith.constant 0 : index
      %c0_130 = arith.constant 0 : index
      %154 = vector.load %arg7[%c2_128, %c0_129, %c0_130] : memref<4x32x8xf32, #tpu.memory_space<vmem>>, vector<1x32x8xf32>
      %155 = vector.shape_cast %154 : vector<1x32x8xf32> to vector<32x8xf32>
      %cst_131 = arith.constant dense<0.000000e+00> : vector<8x8xf32>
      %156 = tpu.matmul %111, %155, %cst_131 {dimension_numbers = #tpu.dot_dimension_numbers<[1], [0], [0], [1], [0, 0, 1, 1], [], []>} : vector<8x32xf32>, vector<32x8xf32>, vector<8x8xf32> -> vector<8x8xf32>
      %c2_132 = arith.constant 2 : index
      %c0_133 = arith.constant 0 : index
      %c0_134 = arith.constant 0 : index
      %157 = vector.load %arg8[%c2_132, %c0_133, %c0_134] : memref<4x1x8xf32, #tpu.memory_space<vmem>>, vector<1x1x8xf32>
      %158 = vector.shape_cast %157 : vector<1x1x8xf32> to vector<1x8xf32>
      %159 = vector.broadcast %158 : vector<1x8xf32> to vector<8x8xf32>
      %160 = arith.addf %156, %159 : vector<8x8xf32>
      %c2_135 = arith.constant 2 : index
      %c0_136 = arith.constant 0 : index
      %c0_137 = arith.constant 0 : index
      %161 = vector.load %arg9[%c2_135, %c0_136, %c0_137] : memref<4x32x8xf32, #tpu.memory_space<vmem>>, vector<1x32x8xf32>
      %162 = vector.shape_cast %161 : vector<1x32x8xf32> to vector<32x8xf32>
      %cst_138 = arith.constant dense<0.000000e+00> : vector<8x8xf32>
      %163 = tpu.matmul %113, %162, %cst_138 {dimension_numbers = #tpu.dot_dimension_numbers<[1], [0], [0], [1], [0, 0, 1, 1], [], []>} : vector<8x32xf32>, vector<32x8xf32>, vector<8x8xf32> -> vector<8x8xf32>
      %c2_139 = arith.constant 2 : index
      %c0_140 = arith.constant 0 : index
      %c0_141 = arith.constant 0 : index
      %164 = vector.load %arg10[%c2_139, %c0_140, %c0_141] : memref<4x1x8xf32, #tpu.memory_space<vmem>>, vector<1x1x8xf32>
      %165 = vector.shape_cast %164 : vector<1x1x8xf32> to vector<1x8xf32>
      %166 = vector.broadcast %165 : vector<1x8xf32> to vector<8x8xf32>
      %167 = arith.addf %163, %166 : vector<8x8xf32>
      %c2_142 = arith.constant 2 : index
      %c0_143 = arith.constant 0 : index
      %c0_144 = arith.constant 0 : index
      %168 = vector.load %arg14[%c2_142, %c0_143, %c0_144] : memref<4x8x8xf32, #tpu.memory_space<vmem>>, vector<1x8x8xf32>
      %169 = vector.shape_cast %168 : vector<1x8x8xf32> to vector<8x8xf32>
      %170 = vector.shape_cast %160 : vector<8x8xf32> to vector<1x8x8xf32>
      tpu.vector_store %arg14[%c2_142, %c0_143, %c0_144], %170 {strides = array<i32>} : memref<4x8x8xf32, #tpu.memory_space<vmem>>, vector<1x8x8xf32>,
      %c2_145 = arith.constant 2 : index
      %c0_146 = arith.constant 0 : index
      %c0_147 = arith.constant 0 : index
      %171 = vector.load %arg15[%c2_145, %c0_146, %c0_147] : memref<4x8x8xf32, #tpu.memory_space<vmem>>, vector<1x8x8xf32>
      %172 = vector.shape_cast %171 : vector<1x8x8xf32> to vector<8x8xf32>
      %173 = vector.shape_cast %167 : vector<8x8xf32> to vector<1x8x8xf32>
      tpu.vector_store %arg15[%c2_145, %c0_146, %c0_147], %173 {strides = array<i32>} : memref<4x8x8xf32, #tpu.memory_space<vmem>>, vector<1x8x8xf32>,
      %c3_148 = arith.constant 3 : index
      %c0_149 = arith.constant 0 : index
      %c0_150 = arith.constant 0 : index
      %174 = vector.load %arg7[%c3_148, %c0_149, %c0_150] : memref<4x32x8xf32, #tpu.memory_space<vmem>>, vector<1x32x8xf32>
      %175 = vector.shape_cast %174 : vector<1x32x8xf32> to vector<32x8xf32>
      %cst_151 = arith.constant dense<0.000000e+00> : vector<8x8xf32>
      %176 = tpu.matmul %111, %175, %cst_151 {dimension_numbers = #tpu.dot_dimension_numbers<[1], [0], [0], [1], [0, 0, 1, 1], [], []>} : vector<8x32xf32>, vector<32x8xf32>, vector<8x8xf32> -> vector<8x8xf32>
      %c3_152 = arith.constant 3 : index
      %c0_153 = arith.constant 0 : index
      %c0_154 = arith.constant 0 : index
      %177 = vector.load %arg8[%c3_152, %c0_153, %c0_154] : memref<4x1x8xf32, #tpu.memory_space<vmem>>, vector<1x1x8xf32>
      %178 = vector.shape_cast %177 : vector<1x1x8xf32> to vector<1x8xf32>
      %179 = vector.broadcast %178 : vector<1x8xf32> to vector<8x8xf32>
      %180 = arith.addf %176, %179 : vector<8x8xf32>
      %c3_155 = arith.constant 3 : index
      %c0_156 = arith.constant 0 : index
      %c0_157 = arith.constant 0 : index
      %181 = vector.load %arg9[%c3_155, %c0_156, %c0_157] : memref<4x32x8xf32, #tpu.memory_space<vmem>>, vector<1x32x8xf32>
      %182 = vector.shape_cast %181 : vector<1x32x8xf32> to vector<32x8xf32>
      %cst_158 = arith.constant dense<0.000000e+00> : vector<8x8xf32>
      %183 = tpu.matmul %113, %182, %cst_158 {dimension_numbers = #tpu.dot_dimension_numbers<[1], [0], [0], [1], [0, 0, 1, 1], [], []>} : vector<8x32xf32>, vector<32x8xf32>, vector<8x8xf32> -> vector<8x8xf32>
      %c3_159 = arith.constant 3 : index
      %c0_160 = arith.constant 0 : index
      %c0_161 = arith.constant 0 : index
      %184 = vector.load %arg10[%c3_159, %c0_160, %c0_161] : memref<4x1x8xf32, #tpu.memory_space<vmem>>, vector<1x1x8xf32>
      %185 = vector.shape_cast %184 : vector<1x1x8xf32> to vector<1x8xf32>
      %186 = vector.broadcast %185 : vector<1x8xf32> to vector<8x8xf32>
      %187 = arith.addf %183, %186 : vector<8x8xf32>
      %c3_162 = arith.constant 3 : index
      %c0_163 = arith.constant 0 : index
      %c0_164 = arith.constant 0 : index
      %188 = vector.load %arg14[%c3_162, %c0_163, %c0_164] : memref<4x8x8xf32, #tpu.memory_space<vmem>>, vector<1x8x8xf32>
      %189 = vector.shape_cast %188 : vector<1x8x8xf32> to vector<8x8xf32>
      %190 = vector.shape_cast %180 : vector<8x8xf32> to vector<1x8x8xf32>
      tpu.vector_store %arg14[%c3_162, %c0_163, %c0_164], %190 {strides = array<i32>} : memref<4x8x8xf32, #tpu.memory_space<vmem>>, vector<1x8x8xf32>,
      %c3_165 = arith.constant 3 : index
      %c0_166 = arith.constant 0 : index
      %c0_167 = arith.constant 0 : index
      %191 = vector.load %arg15[%c3_165, %c0_166, %c0_167] : memref<4x8x8xf32, #tpu.memory_space<vmem>>, vector<1x8x8xf32>
      %192 = vector.shape_cast %191 : vector<1x8x8xf32> to vector<8x8xf32>
      %193 = vector.shape_cast %187 : vector<8x8xf32> to vector<1x8x8xf32>
      tpu.vector_store %arg15[%c3_165, %c0_166, %c0_167], %193 {strides = array<i32>} : memref<4x8x8xf32, #tpu.memory_space<vmem>>, vector<1x8x8xf32>,
    } else {
    }
    %c0 = arith.constant 0 : index
    %c0_1 = arith.constant 0 : index
    %c0_2 = arith.constant 0 : index
    %3 = vector.load %arg2[%c0, %c0_1, %c0_2] : memref<1x8x32xf32, #tpu.memory_space<vmem>>, vector<1x8x32xf32>
    %4 = vector.shape_cast %3 : vector<1x8x32xf32> to vector<8x32xf32>
    %c0_3 = arith.constant 0 : index
    %c0_4 = arith.constant 0 : index
    %c0_5 = arith.constant 0 : index
    %5 = vector.load %arg5[%c0_3, %c0_4, %c0_5] : memref<4x32x8xf32, #tpu.memory_space<vmem>>, vector<1x32x8xf32>
    %6 = vector.shape_cast %5 : vector<1x32x8xf32> to vector<32x8xf32>
    %cst = arith.constant dense<0.000000e+00> : vector<8x8xf32>
    %7 = tpu.matmul %4, %6, %cst {dimension_numbers = #tpu.dot_dimension_numbers<[1], [0], [0], [1], [0, 0, 1, 1], [], []>} : vector<8x32xf32>, vector<32x8xf32>, vector<8x8xf32> -> vector<8x8xf32>
    %c0_6 = arith.constant 0 : index
    %c0_7 = arith.constant 0 : index
    %c0_8 = arith.constant 0 : index
    %8 = vector.load %arg6[%c0_6, %c0_7, %c0_8] : memref<4x1x8xf32, #tpu.memory_space<vmem>>, vector<1x1x8xf32>
    %9 = vector.shape_cast %8 : vector<1x1x8xf32> to vector<1x8xf32>
    %10 = vector.broadcast %9 : vector<1x8xf32> to vector<8x8xf32>
    %11 = arith.addf %7, %10 : vector<8x8xf32>
    %c0_9 = arith.constant 0 : index
    %c0_10 = arith.constant 0 : index
    %c0_11 = arith.constant 0 : index
    %12 = vector.load %arg14[%c0_9, %c0_10, %c0_11] : memref<4x8x8xf32, #tpu.memory_space<vmem>>, vector<1x8x8xf32>
    %13 = vector.shape_cast %12 : vector<1x8x8xf32> to vector<8x8xf32>
    %cst_12 = arith.constant dense<0.000000e+00> : vector<8x8xf32>
    %14 = tpu.matmul %11, %13, %cst_12 {dimension_numbers = #tpu.dot_dimension_numbers<[1], [1], [0], [0], [0, 0, 1, 0], [], []>} : vector<8x8xf32>, vector<8x8xf32>, vector<8x8xf32> -> vector<8x8xf32>
    %cst_13 = arith.constant dense<0xFF800000> : vector<8xf32>
    %15 = vector.multi_reduction <maximumf>, %14, %cst_13 [1] : vector<8x8xf32> to vector<8xf32>
    %16 = vector.shape_cast %15 : vector<8xf32> to vector<8x1xf32>
    %17 = vector.broadcast %16 : vector<8x1xf32> to vector<8x8xf32>
    %18 = arith.subf %14, %17 : vector<8x8xf32>
    %19 = math.exp %18 : vector<8x8xf32>
    %cst_14 = arith.constant dense<0.000000e+00> : vector<8xf32>
    %20 = vector.multi_reduction <add>, %19, %cst_14 [1] : vector<8x8xf32> to vector<8xf32>
    %21 = vector.shape_cast %20 : vector<8xf32> to vector<8x1xf32>
    %c0_15 = arith.constant 0 : index
    %c0_16 = arith.constant 0 : index
    %c0_17 = arith.constant 0 : index
    %22 = vector.load %arg15[%c0_15, %c0_16, %c0_17] : memref<4x8x8xf32, #tpu.memory_space<vmem>>, vector<1x8x8xf32>
    %23 = vector.shape_cast %22 : vector<1x8x8xf32> to vector<8x8xf32>
    %cst_18 = arith.constant dense<0.000000e+00> : vector<8x8xf32>
    %24 = tpu.matmul %19, %23, %cst_18 {dimension_numbers = #tpu.dot_dimension_numbers<[1], [0], [0], [1], [0, 0, 1, 1], [], []>} : vector<8x8xf32>, vector<8x8xf32>, vector<8x8xf32> -> vector<8x8xf32>
    %25 = tpu.reciprocal %21 {approx = true} : vector<8x1xf32> -> vector<8x1xf32>
    %26 = vector.broadcast %25 : vector<8x1xf32> to vector<8x8xf32>
    %27 = arith.mulf %24, %26 : vector<8x8xf32>
    %c0_19 = arith.constant 0 : index
    %c0_20 = arith.constant 0 : index
    %28 = vector.load %arg16[%c0_19, %c0_20] : memref<8x32xf32, #tpu.memory_space<vmem>>, vector<8x8xf32>
    tpu.vector_store %arg16[%c0_19, %c0_20], %27 {strides = array<i32>} : memref<8x32xf32, #tpu.memory_space<vmem>>, vector<8x8xf32>,
    %c1 = arith.constant 1 : index
    %c0_21 = arith.constant 0 : index
    %c0_22 = arith.constant 0 : index
    %29 = vector.load %arg5[%c1, %c0_21, %c0_22] : memref<4x32x8xf32, #tpu.memory_space<vmem>>, vector<1x32x8xf32>
    %30 = vector.shape_cast %29 : vector<1x32x8xf32> to vector<32x8xf32>
    %cst_23 = arith.constant dense<0.000000e+00> : vector<8x8xf32>
    %31 = tpu.matmul %4, %30, %cst_23 {dimension_numbers = #tpu.dot_dimension_numbers<[1], [0], [0], [1], [0, 0, 1, 1], [], []>} : vector<8x32xf32>, vector<32x8xf32>, vector<8x8xf32> -> vector<8x8xf32>
    %c1_24 = arith.constant 1 : index
    %c0_25 = arith.constant 0 : index
    %c0_26 = arith.constant 0 : index
    %32 = vector.load %arg6[%c1_24, %c0_25, %c0_26] : memref<4x1x8xf32, #tpu.memory_space<vmem>>, vector<1x1x8xf32>
    %33 = vector.shape_cast %32 : vector<1x1x8xf32> to vector<1x8xf32>
    %34 = vector.broadcast %33 : vector<1x8xf32> to vector<8x8xf32>
    %35 = arith.addf %31, %34 : vector<8x8xf32>
    %c1_27 = arith.constant 1 : index
    %c0_28 = arith.constant 0 : index
    %c0_29 = arith.constant 0 : index
    %36 = vector.load %arg14[%c1_27, %c0_28, %c0_29] : memref<4x8x8xf32, #tpu.memory_space<vmem>>, vector<1x8x8xf32>
    %37 = vector.shape_cast %36 : vector<1x8x8xf32> to vector<8x8xf32>
    %cst_30 = arith.constant dense<0.000000e+00> : vector<8x8xf32>
    %38 = tpu.matmul %35, %37, %cst_30 {dimension_numbers = #tpu.dot_dimension_numbers<[1], [1], [0], [0], [0, 0, 1, 0], [], []>} : vector<8x8xf32>, vector<8x8xf32>, vector<8x8xf32> -> vector<8x8xf32>
    %cst_31 = arith.constant dense<0xFF800000> : vector<8xf32>
    %39 = vector.multi_reduction <maximumf>, %38, %cst_31 [1] : vector<8x8xf32> to vector<8xf32>
    %40 = vector.shape_cast %39 : vector<8xf32> to vector<8x1xf32>
    %41 = vector.broadcast %40 : vector<8x1xf32> to vector<8x8xf32>
    %42 = arith.subf %38, %41 : vector<8x8xf32>
    %43 = math.exp %42 : vector<8x8xf32>
    %cst_32 = arith.constant dense<0.000000e+00> : vector<8xf32>
    %44 = vector.multi_reduction <add>, %43, %cst_32 [1] : vector<8x8xf32> to vector<8xf32>
    %45 = vector.shape_cast %44 : vector<8xf32> to vector<8x1xf32>
    %c1_33 = arith.constant 1 : index
    %c0_34 = arith.constant 0 : index
    %c0_35 = arith.constant 0 : index
    %46 = vector.load %arg15[%c1_33, %c0_34, %c0_35] : memref<4x8x8xf32, #tpu.memory_space<vmem>>, vector<1x8x8xf32>
    %47 = vector.shape_cast %46 : vector<1x8x8xf32> to vector<8x8xf32>
    %cst_36 = arith.constant dense<0.000000e+00> : vector<8x8xf32>
    %48 = tpu.matmul %43, %47, %cst_36 {dimension_numbers = #tpu.dot_dimension_numbers<[1], [0], [0], [1], [0, 0, 1, 1], [], []>} : vector<8x8xf32>, vector<8x8xf32>, vector<8x8xf32> -> vector<8x8xf32>
    %49 = tpu.reciprocal %45 {approx = true} : vector<8x1xf32> -> vector<8x1xf32>
    %50 = vector.broadcast %49 : vector<8x1xf32> to vector<8x8xf32>
    %51 = arith.mulf %48, %50 : vector<8x8xf32>
    %c0_37 = arith.constant 0 : index
    %c8 = arith.constant 8 : index
    %52 = vector.load %arg16[%c0_37, %c8] : memref<8x32xf32, #tpu.memory_space<vmem>>, vector<8x8xf32>
    tpu.vector_store %arg16[%c0_37, %c8], %51 {strides = array<i32>} : memref<8x32xf32, #tpu.memory_space<vmem>>, vector<8x8xf32>,
    %c2 = arith.constant 2 : index
    %c0_38 = arith.constant 0 : index
    %c0_39 = arith.constant 0 : index
    %53 = vector.load %arg5[%c2, %c0_38, %c0_39] : memref<4x32x8xf32, #tpu.memory_space<vmem>>, vector<1x32x8xf32>
    %54 = vector.shape_cast %53 : vector<1x32x8xf32> to vector<32x8xf32>
    %cst_40 = arith.constant dense<0.000000e+00> : vector<8x8xf32>
    %55 = tpu.matmul %4, %54, %cst_40 {dimension_numbers = #tpu.dot_dimension_numbers<[1], [0], [0], [1], [0, 0, 1, 1], [], []>} : vector<8x32xf32>, vector<32x8xf32>, vector<8x8xf32> -> vector<8x8xf32>
    %c2_41 = arith.constant 2 : index
    %c0_42 = arith.constant 0 : index
    %c0_43 = arith.constant 0 : index
    %56 = vector.load %arg6[%c2_41, %c0_42, %c0_43] : memref<4x1x8xf32, #tpu.memory_space<vmem>>, vector<1x1x8xf32>
    %57 = vector.shape_cast %56 : vector<1x1x8xf32> to vector<1x8xf32>
    %58 = vector.broadcast %57 : vector<1x8xf32> to vector<8x8xf32>
    %59 = arith.addf %55, %58 : vector<8x8xf32>
    %c2_44 = arith.constant 2 : index
    %c0_45 = arith.constant 0 : index
    %c0_46 = arith.constant 0 : index
    %60 = vector.load %arg14[%c2_44, %c0_45, %c0_46] : memref<4x8x8xf32, #tpu.memory_space<vmem>>, vector<1x8x8xf32>
    %61 = vector.shape_cast %60 : vector<1x8x8xf32> to vector<8x8xf32>
    %cst_47 = arith.constant dense<0.000000e+00> : vector<8x8xf32>
    %62 = tpu.matmul %59, %61, %cst_47 {dimension_numbers = #tpu.dot_dimension_numbers<[1], [1], [0], [0], [0, 0, 1, 0], [], []>} : vector<8x8xf32>, vector<8x8xf32>, vector<8x8xf32> -> vector<8x8xf32>
    %cst_48 = arith.constant dense<0xFF800000> : vector<8xf32>
    %63 = vector.multi_reduction <maximumf>, %62, %cst_48 [1] : vector<8x8xf32> to vector<8xf32>
    %64 = vector.shape_cast %63 : vector<8xf32> to vector<8x1xf32>
    %65 = vector.broadcast %64 : vector<8x1xf32> to vector<8x8xf32>
    %66 = arith.subf %62, %65 : vector<8x8xf32>
    %67 = math.exp %66 : vector<8x8xf32>
    %cst_49 = arith.constant dense<0.000000e+00> : vector<8xf32>
    %68 = vector.multi_reduction <add>, %67, %cst_49 [1] : vector<8x8xf32> to vector<8xf32>
    %69 = vector.shape_cast %68 : vector<8xf32> to vector<8x1xf32>
    %c2_50 = arith.constant 2 : index
    %c0_51 = arith.constant 0 : index
    %c0_52 = arith.constant 0 : index
    %70 = vector.load %arg15[%c2_50, %c0_51, %c0_52] : memref<4x8x8xf32, #tpu.memory_space<vmem>>, vector<1x8x8xf32>
    %71 = vector.shape_cast %70 : vector<1x8x8xf32> to vector<8x8xf32>
    %cst_53 = arith.constant dense<0.000000e+00> : vector<8x8xf32>
    %72 = tpu.matmul %67, %71, %cst_53 {dimension_numbers = #tpu.dot_dimension_numbers<[1], [0], [0], [1], [0, 0, 1, 1], [], []>} : vector<8x8xf32>, vector<8x8xf32>, vector<8x8xf32> -> vector<8x8xf32>
    %73 = tpu.reciprocal %69 {approx = true} : vector<8x1xf32> -> vector<8x1xf32>
    %74 = vector.broadcast %73 : vector<8x1xf32> to vector<8x8xf32>
    %75 = arith.mulf %72, %74 : vector<8x8xf32>
    %c0_54 = arith.constant 0 : index
    %c16 = arith.constant 16 : index
    %76 = vector.load %arg16[%c0_54, %c16] : memref<8x32xf32, #tpu.memory_space<vmem>>, vector<8x8xf32>
    tpu.vector_store %arg16[%c0_54, %c16], %75 {strides = array<i32>} : memref<8x32xf32, #tpu.memory_space<vmem>>, vector<8x8xf32>,
    %c3 = arith.constant 3 : index
    %c0_55 = arith.constant 0 : index
    %c0_56 = arith.constant 0 : index
    %77 = vector.load %arg5[%c3, %c0_55, %c0_56] : memref<4x32x8xf32, #tpu.memory_space<vmem>>, vector<1x32x8xf32>
    %78 = vector.shape_cast %77 : vector<1x32x8xf32> to vector<32x8xf32>
    %cst_57 = arith.constant dense<0.000000e+00> : vector<8x8xf32>
    %79 = tpu.matmul %4, %78, %cst_57 {dimension_numbers = #tpu.dot_dimension_numbers<[1], [0], [0], [1], [0, 0, 1, 1], [], []>} : vector<8x32xf32>, vector<32x8xf32>, vector<8x8xf32> -> vector<8x8xf32>
    %c3_58 = arith.constant 3 : index
    %c0_59 = arith.constant 0 : index
    %c0_60 = arith.constant 0 : index
    %80 = vector.load %arg6[%c3_58, %c0_59, %c0_60] : memref<4x1x8xf32, #tpu.memory_space<vmem>>, vector<1x1x8xf32>
    %81 = vector.shape_cast %80 : vector<1x1x8xf32> to vector<1x8xf32>
    %82 = vector.broadcast %81 : vector<1x8xf32> to vector<8x8xf32>
    %83 = arith.addf %79, %82 : vector<8x8xf32>
    %c3_61 = arith.constant 3 : index
    %c0_62 = arith.constant 0 : index
    %c0_63 = arith.constant 0 : index
    %84 = vector.load %arg14[%c3_61, %c0_62, %c0_63] : memref<4x8x8xf32, #tpu.memory_space<vmem>>, vector<1x8x8xf32>
    %85 = vector.shape_cast %84 : vector<1x8x8xf32> to vector<8x8xf32>
    %cst_64 = arith.constant dense<0.000000e+00> : vector<8x8xf32>
    %86 = tpu.matmul %83, %85, %cst_64 {dimension_numbers = #tpu.dot_dimension_numbers<[1], [1], [0], [0], [0, 0, 1, 0], [], []>} : vector<8x8xf32>, vector<8x8xf32>, vector<8x8xf32> -> vector<8x8xf32>
    %cst_65 = arith.constant dense<0xFF800000> : vector<8xf32>
    %87 = vector.multi_reduction <maximumf>, %86, %cst_65 [1] : vector<8x8xf32> to vector<8xf32>
    %88 = vector.shape_cast %87 : vector<8xf32> to vector<8x1xf32>
    %89 = vector.broadcast %88 : vector<8x1xf32> to vector<8x8xf32>
    %90 = arith.subf %86, %89 : vector<8x8xf32>
    %91 = math.exp %90 : vector<8x8xf32>
    %cst_66 = arith.constant dense<0.000000e+00> : vector<8xf32>
    %92 = vector.multi_reduction <add>, %91, %cst_66 [1] : vector<8x8xf32> to vector<8xf32>
    %93 = vector.shape_cast %92 : vector<8xf32> to vector<8x1xf32>
    %c3_67 = arith.constant 3 : index
    %c0_68 = arith.constant 0 : index
    %c0_69 = arith.constant 0 : index
    %94 = vector.load %arg15[%c3_67, %c0_68, %c0_69] : memref<4x8x8xf32, #tpu.memory_space<vmem>>, vector<1x8x8xf32>
    %95 = vector.shape_cast %94 : vector<1x8x8xf32> to vector<8x8xf32>
    %cst_70 = arith.constant dense<0.000000e+00> : vector<8x8xf32>
    %96 = tpu.matmul %91, %95, %cst_70 {dimension_numbers = #tpu.dot_dimension_numbers<[1], [0], [0], [1], [0, 0, 1, 1], [], []>} : vector<8x8xf32>, vector<8x8xf32>, vector<8x8xf32> -> vector<8x8xf32>
    %97 = tpu.reciprocal %93 {approx = true} : vector<8x1xf32> -> vector<8x1xf32>
    %98 = vector.broadcast %97 : vector<8x1xf32> to vector<8x8xf32>
    %99 = arith.mulf %96, %98 : vector<8x8xf32>
    %c0_71 = arith.constant 0 : index
    %c24 = arith.constant 24 : index
    %100 = vector.load %arg16[%c0_71, %c24] : memref<8x32xf32, #tpu.memory_space<vmem>>, vector<8x8xf32>
    tpu.vector_store %arg16[%c0_71, %c24], %99 {strides = array<i32>} : memref<8x32xf32, #tpu.memory_space<vmem>>, vector<8x8xf32>,
    %c0_72 = arith.constant 0 : index
    %c0_73 = arith.constant 0 : index
    %101 = vector.load %arg16[%c0_72, %c0_73] : memref<8x32xf32, #tpu.memory_space<vmem>>, vector<8x32xf32>
    %c0_74 = arith.constant 0 : index
    %c0_75 = arith.constant 0 : index
    %102 = vector.load %arg11[%c0_74, %c0_75] : memref<32x32xf32, #tpu.memory_space<vmem>>, vector<32x32xf32>
    %cst_76 = arith.constant dense<0.000000e+00> : vector<8x32xf32>
    %103 = tpu.matmul %101, %102, %cst_76 {dimension_numbers = #tpu.dot_dimension_numbers<[1], [0], [0], [1], [0, 0, 1, 1], [], []>} : vector<8x32xf32>, vector<32x32xf32>, vector<8x32xf32> -> vector<8x32xf32>
    %c0_77 = arith.constant 0 : index
    %c0_78 = arith.constant 0 : index
    %104 = vector.load %arg12[%c0_77, %c0_78] : memref<1x32xf32, #tpu.memory_space<vmem>>, vector<1x32xf32>
    %105 = vector.broadcast %104 : vector<1x32xf32> to vector<8x32xf32>
    %106 = arith.addf %103, %105 : vector<8x32xf32>
    %c0_79 = arith.constant 0 : index
    %c0_80 = arith.constant 0 : index
    %c0_81 = arith.constant 0 : index
    %107 = vector.load %arg13[%c0_79, %c0_80, %c0_81] : memref<1x8x32xf32, #tpu.memory_space<vmem>>, vector<1x8x32xf32>
    %108 = vector.shape_cast %107 : vector<1x8x32xf32> to vector<8x32xf32>
    %109 = vector.shape_cast %106 : vector<8x32xf32> to vector<1x8x32xf32>
    tpu.vector_store %arg13[%c0_79, %c0_80, %c0_81], %109 {strides = array<i32>} : memref<1x8x32xf32, #tpu.memory_space<vmem>>, vector<1x8x32xf32>,
    return
  }
  func.func @transform_0(%arg0: i32, %arg1: i32) -> (i32, i32, i32) {
    %c0_i32 = arith.constant 0 : i32
    %c0_i32_0 = arith.constant 0 : i32
    return %arg0, %arg1, %c0_i32 : i32, i32, i32
  }
  func.func @transform_1(%arg0: i32, %arg1: i32) -> (i32, i32, i32) {
    %c0_i32 = arith.constant 0 : i32
    %c0_i32_0 = arith.constant 0 : i32
    %c0_i32_1 = arith.constant 0 : i32
    return %arg0, %c0_i32, %c0_i32_0 : i32, i32, i32
  }
  func.func @transform_2(%arg0: i32, %arg1: i32) -> (i32, i32, i32) {
    %c0_i32 = arith.constant 0 : i32
    %c0_i32_0 = arith.constant 0 : i32
    %c0_i32_1 = arith.constant 0 : i32
    return %arg0, %c0_i32, %c0_i32_0 : i32, i32, i32
  }
  func.func @transform_3(%arg0: i32, %arg1: i32) -> (i32, i32, i32) {
    %c0_i32 = arith.constant 0 : i32
    %c0_i32_0 = arith.constant 0 : i32
    %c0_i32_1 = arith.constant 0 : i32
    %c0_i32_2 = arith.constant 0 : i32
    return %c0_i32, %c0_i32_0, %c0_i32_1 : i32, i32, i32
  }
  func.func @transform_4(%arg0: i32, %arg1: i32) -> (i32, i32, i32) {
    %c0_i32 = arith.constant 0 : i32
    %c0_i32_0 = arith.constant 0 : i32
    %c0_i32_1 = arith.constant 0 : i32
    %c0_i32_2 = arith.constant 0 : i32
    return %c0_i32, %c0_i32_0, %c0_i32_1 : i32, i32, i32
  }
  func.func @transform_5(%arg0: i32, %arg1: i32) -> (i32, i32, i32) {
    %c0_i32 = arith.constant 0 : i32
    %c0_i32_0 = arith.constant 0 : i32
    %c0_i32_1 = arith.constant 0 : i32
    %c0_i32_2 = arith.constant 0 : i32
    return %c0_i32, %c0_i32_0, %c0_i32_1 : i32, i32, i32
  }
  func.func @transform_6(%arg0: i32, %arg1: i32) -> (i32, i32, i32) {
    %c0_i32 = arith.constant 0 : i32
    %c0_i32_0 = arith.constant 0 : i32
    %c0_i32_1 = arith.constant 0 : i32
    %c0_i32_2 = arith.constant 0 : i32
    return %c0_i32, %c0_i32_0, %c0_i32_1 : i32, i32, i32
  }
  func.func @transform_7(%arg0: i32, %arg1: i32) -> (i32, i32, i32) {
    %c0_i32 = arith.constant 0 : i32
    %c0_i32_0 = arith.constant 0 : i32
    %c0_i32_1 = arith.constant 0 : i32
    %c0_i32_2 = arith.constant 0 : i32
    return %c0_i32, %c0_i32_0, %c0_i32_1 : i32, i32, i32
  }
  func.func @transform_8(%arg0: i32, %arg1: i32) -> (i32, i32, i32) {
    %c0_i32 = arith.constant 0 : i32
    %c0_i32_0 = arith.constant 0 : i32
    %c0_i32_1 = arith.constant 0 : i32
    %c0_i32_2 = arith.constant 0 : i32
    return %c0_i32, %c0_i32_0, %c0_i32_1 : i32, i32, i32
  }
  func.func @transform_9(%arg0: i32, %arg1: i32) -> (i32, i32) {
    %c0_i32 = arith.constant 0 : i32
    %c0_i32_0 = arith.constant 0 : i32
    %c0_i32_1 = arith.constant 0 : i32
    return %c0_i32, %c0_i32_0 : i32, i32
  }
  func.func @transform_10(%arg0: i32, %arg1: i32) -> (i32, i32) {
    %c0_i32 = arith.constant 0 : i32
    %c0_i32_0 = arith.constant 0 : i32
    %c0_i32_1 = arith.constant 0 : i32
    return %c0_i32, %c0_i32_0 : i32, i32
  }
  func.func @transform_11(%arg0: i32, %arg1: i32) -> (i32, i32, i32) {
    %c0_i32 = arith.constant 0 : i32
    %c0_i32_0 = arith.constant 0 : i32
    return %arg0, %arg1, %c0_i32 : i32, i32, i32
  }
}

</mosaic_0001>

<llo_original>
// kernel: tpu_custom_call.1
$region0: #{tpu_custom_call.1}
  #allocation0 [shape = 'u32[]', space=smem, size = 0x4, offset = 0x4, fixed_abs, tag = 'smem constant byte address 0x4 - core index']
  #allocation1 [shape = 'u32[144,128]{1,0:T(1,128)}', space=vmem, size = 0x12000, scoped, tag = 'internal scratch']
  #allocation2 [shape = 'f32[4,8,8]{2,1,0:T(8,128)}', space=vmem, size = 0x4000, scoped, tag = 'scratch operand']
  #allocation3 [shape = 'f32[4,8,8]{2,1,0:T(8,128)}', space=vmem, size = 0x4000, scoped, tag = 'scratch operand']
  #allocation4 [shape = 'f32[8,32]{1,0:T(8,128)}', space=vmem, size = 0x1000, scoped, tag = 'scratch operand']
  %s0 = inlined_call_operand.vmem [shape: f32[2,8,32], index: 0, kind: input, shape index: {}]
  %s1 = inlined_call_operand.vmem [shape: f32[2,8,32], index: 1, kind: input, shape index: {}]
  %s2 = inlined_call_operand.vmem [shape: f32[2,8,32], index: 2, kind: input, shape index: {}]
  %s3 = inlined_call_operand.vmem [shape: f32[4,32,8], index: 3, kind: input, shape index: {}]
  %s4 = inlined_call_operand.vmem [shape: f32[4,1,8], index: 4, kind: input, shape index: {}]
  %s5 = inlined_call_operand.vmem [shape: f32[4,32,8], index: 5, kind: input, shape index: {}]
  %s6 = inlined_call_operand.vmem [shape: f32[4,1,8], index: 6, kind: input, shape index: {}]
  %s7 = inlined_call_operand.vmem [shape: f32[4,32,8], index: 7, kind: input, shape index: {}]
  %s8 = inlined_call_operand.vmem [shape: f32[4,1,8], index: 8, kind: input, shape index: {}]
  %s9 = inlined_call_operand.vmem [shape: f32[32,32], index: 9, kind: input, shape index: {}]
  %s10 = inlined_call_operand.vmem [shape: f32[1,32], index: 10, kind: input, shape index: {}]
  %s11 = inlined_call_operand.hbm [shape: f32[2,8,32], index: 11, kind: output, shape index: {}]
  %s12 = sld [smem:[#allocation0]]
  $region81: #{tpu_custom_call.1} parent=0
    _
  %s14 = ssub.s32 1, %s12
  %s15 = scalar_select 0, %s14, %s12
  $region1: #{tpu_custom_call.1} parent=0
    #allocation5 [shape = 'u8[8192]{0}', space=vmem, size = 0x2000, scoped, tag = 'output window, operand 0']
    #allocation6 [shape = 's32[2]{0}', space=sflag, size = 0x8, scoped, tag = 'scoped memory for tpu_custom_call.1']
    %16 = vsyncpa [#allocation6], 0
    %s17 = scalar_lea.sflag [#allocation6], 1
    %18 = vsyncpa %s17, 0
    loop: start=0, step=1, limit=4
    $region2: #{tpu_custom_call.1} parent=1 // loop_pre_header
      _
    $region3: #{tpu_custom_call.1} parent=1 // loop_header
      %s20 = sphi 0, %s24
      %p21 = scmp.ge.s32.totalorder %s20, 4
      %s27 = sphi 0, %s39
      %s28 = sphi 0, %s35
      %s29 = sphi 0, %s27
      %s30 = sphi 0, %s28
      %s31 = sphi 0, %s29
      %s32 = sphi 0, %s30
      %s44 = sphi 0, %s46
      %s47 = sphi 0, %s44
      %s48 = sphi 0, %s47
      %s64 = sphi 0, %s48
      %s70 = sphi 0, %s72
      %s73 = sphi 0, %s70
      %s74 = sphi 0, %s73
      %s90 = sphi 0, %s74
      %s96 = sphi 0, %s98
      %s99 = sphi 0, %s96
      %s100 = sphi 0, %s99
      %s116 = sphi 0, %s100
      %s120 = sphi 0, %s120
      %s122 = sphi 0, %s120
      %s123 = sphi 0, %s122
      %s137 = sphi 0, %s123
      %s141 = sphi 0, %s141
      %s143 = sphi 0, %s141
      %s144 = sphi 0, %s143
      %s158 = sphi 0, %s144
      %s162 = sphi 0, %s162
      %s164 = sphi 0, %s162
      %s165 = sphi 0, %s164
      %s179 = sphi 0, %s165
      %s183 = sphi 0, %s183
      %s185 = sphi 0, %s183
      %s186 = sphi 0, %s185
      %s200 = sphi 0, %s186
      %s204 = sphi 0, %s204
      %s206 = sphi 0, %s204
      %s207 = sphi 0, %s206
      %s221 = sphi 0, %s207
      %s225 = sphi 0, %s225
      %s227 = sphi 0, %s225
      %s228 = sphi 0, %s227
      %s242 = sphi 0, %s228
      %s246 = sphi 0, %s246
      %s248 = sphi 0, %s246
      %s249 = sphi 0, %s248
      %s263 = sphi 0, %s249
      %s267 = sphi 0, %s267
      %s269 = sphi 0, %s267
      %s270 = sphi 0, %s269
      %s284 = sphi 0, %s270
      %s292 = sphi 0, %s294
      %s295 = sphi 0, %s292
      %s296 = sphi 0, %s295
      %s312 = sphi 0, %s296
    $region4: #{tpu_custom_call.1} parent=1 // loop_header_branch
      %23 = sbr.rel (%p21) target = $region8
    $region5: #{tpu_custom_call.1} parent=1 // loop_body
      %s25 = ssub.s32 %s20, 1
      %s26 = ssub.s32 %s20, 2
      %s33 = sadd.s32 1, %s28
      %p34 = scmp.ge.s32.totalorder %s33, 1
      %s35 = scalar_select %p34, 0, %s33
      %s36 = sadd.s32 1, %s27
      %s37 = scalar_select %p34, %s36, %s27
      %p38 = scmp.ge.s32.totalorder %s37, 2
      %s39 = scalar_select %p38, 0, %s37
      %s40 = ssub.s32 %s27, %s39
      %s41 = ssub.s32 %s28, %s35
      %s42 = sor.u32 %s40, %s41
      %p43 = scmp.eq.s32.totalorder %s42, 0
      %s45 = sadd.s32 %s44, 1
      %s46 = scalar_select %p43, %s44, %s45
      %p49 = pneg %p43
      %p50 = scmp.eq.s32.totalorder %s20, 1
      %p51 = por %p49, %p50
      %p52 = scmp.ne.s32.totalorder %s44, %s47
      %p53 = scmp.eq.s32.totalorder %s20, 0
      %p54 = por %p52, %p53
      %p55 = scmp.ne.s32.totalorder %s44, %s47
      %p56 = scmp.eq.s32.totalorder %s25, 1
      %p57 = por %p55, %p56
      %p58 = scmp.ne.s32.totalorder %s47, %s48
      %p59 = scmp.eq.s32.totalorder %s25, 0
      %p60 = por %p58, %p59
      %p61 = scmp.ne.s32.totalorder %s47, %s48
      %p62 = scmp.eq.s32.totalorder %s26, 1
      %p63 = por %p61, %p62
      %p65 = scmp.ne.s32.totalorder %s48, %s64
      %p66 = scmp.eq.s32.totalorder %s26, 0
      %p67 = por %p65, %p66
      %s68 = ssub.s32 %s27, %s39
      %p69 = scmp.eq.s32.totalorder %s68, 0
      %s71 = sadd.s32 %s70, 1
      %s72 = scalar_select %p69, %s70, %s71
      %p75 = pneg %p69
      %p76 = scmp.eq.s32.totalorder %s20, 1
      %p77 = por %p75, %p76
      %p78 = scmp.ne.s32.totalorder %s70, %s73
      %p79 = scmp.eq.s32.totalorder %s20, 0
      %p80 = por %p78, %p79
      %p81 = scmp.ne.s32.totalorder %s70, %s73
      %p82 = scmp.eq.s32.totalorder %s25, 1
      %p83 = por %p81, %p82
      %p84 = scmp.ne.s32.totalorder %s73, %s74
      %p85 = scmp.eq.s32.totalorder %s25, 0
      %p86 = por %p84, %p85
      %p87 = scmp.ne.s32.totalorder %s73, %s74
      %p88 = scmp.eq.s32.totalorder %s26, 1
      %p89 = por %p87, %p88
      %p91 = scmp.ne.s32.totalorder %s74, %s90
      %p92 = scmp.eq.s32.totalorder %s26, 0
      %p93 = por %p91, %p92
      %s94 = ssub.s32 %s27, %s39
      %p95 = scmp.eq.s32.totalorder %s94, 0
      %s97 = sadd.s32 %s96, 1
      %s98 = scalar_select %p95, %s96, %s97
      %p101 = pneg %p95
      %p102 = scmp.eq.s32.totalorder %s20, 1
      %p103 = por %p101, %p102
      %p104 = scmp.ne.s32.totalorder %s96, %s99
      %p105 = scmp.eq.s32.totalorder %s20, 0
      %p106 = por %p104, %p105
      %p107 = scmp.ne.s32.totalorder %s96, %s99
      %p108 = scmp.eq.s32.totalorder %s25, 1
      %p109 = por %p107, %p108
      %p110 = scmp.ne.s32.totalorder %s99, %s100
      %p111 = scmp.eq.s32.totalorder %s25, 0
      %p112 = por %p110, %p111
      %p113 = scmp.ne.s32.totalorder %s99, %s100
      %p114 = scmp.eq.s32.totalorder %s26, 1
      %p115 = por %p113, %p114
      %p117 = scmp.ne.s32.totalorder %s100, %s116
      %p118 = scmp.eq.s32.totalorder %s26, 0
      %p119 = por %p117, %p118
      %s121 = sadd.s32 %s120, 1
      %p124 = scmp.eq.s32.totalorder %s20, 1
      %p125 = scmp.ne.s32.totalorder %s120, %s122
      %p126 = scmp.eq.s32.totalorder %s20, 0
      %p127 = por %p125, %p126
      %p128 = scmp.ne.s32.totalorder %s120, %s122
      %p129 = scmp.eq.s32.totalorder %s25, 1
      %p130 = por %p128, %p129
      %p131 = scmp.ne.s32.totalorder %s122, %s123
      %p132 = scmp.eq.s32.totalorder %s25, 0
      %p133 = por %p131, %p132
      %p134 = scmp.ne.s32.totalorder %s122, %s123
      %p135 = scmp.eq.s32.totalorder %s26, 1
      %p136 = por %p134, %p135
      %p138 = scmp.ne.s32.totalorder %s123, %s137
      %p139 = scmp.eq.s32.totalorder %s26, 0
      %p140 = por %p138, %p139
      %s142 = sadd.s32 %s141, 1
      %p145 = scmp.eq.s32.totalorder %s20, 1
      %p146 = scmp.ne.s32.totalorder %s141, %s143
      %p147 = scmp.eq.s32.totalorder %s20, 0
      %p148 = por %p146, %p147
      %p149 = scmp.ne.s32.totalorder %s141, %s143
      %p150 = scmp.eq.s32.totalorder %s25, 1
      %p151 = por %p149, %p150
      %p152 = scmp.ne.s32.totalorder %s143, %s144
      %p153 = scmp.eq.s32.totalorder %s25, 0
      %p154 = por %p152, %p153
      %p155 = scmp.ne.s32.totalorder %s143, %s144
      %p156 = scmp.eq.s32.totalorder %s26, 1
      %p157 = por %p155, %p156
      %p159 = scmp.ne.s32.totalorder %s144, %s158
      %p160 = scmp.eq.s32.totalorder %s26, 0
      %p161 = por %p159, %p160
      %s163 = sadd.s32 %s162, 1
      %p166 = scmp.eq.s32.totalorder %s20, 1
      %p167 = scmp.ne.s32.totalorder %s162, %s164
      %p168 = scmp.eq.s32.totalorder %s20, 0
      %p169 = por %p167, %p168
      %p170 = scmp.ne.s32.totalorder %s162, %s164
      %p171 = scmp.eq.s32.totalorder %s25, 1
      %p172 = por %p170, %p171
      %p173 = scmp.ne.s32.totalorder %s164, %s165
      %p174 = scmp.eq.s32.totalorder %s25, 0
      %p175 = por %p173, %p174
      %p176 = scmp.ne.s32.totalorder %s164, %s165
      %p177 = scmp.eq.s32.totalorder %s26, 1
      %p178 = por %p176, %p177
      %p180 = scmp.ne.s32.totalorder %s165, %s179
      %p181 = scmp.eq.s32.totalorder %s26, 0
      %p182 = por %p180, %p181
      %s184 = sadd.s32 %s183, 1
      %p187 = scmp.eq.s32.totalorder %s20, 1
      %p188 = scmp.ne.s32.totalorder %s183, %s185
      %p189 = scmp.eq.s32.totalorder %s20, 0
      %p190 = por %p188, %p189
      %p191 = scmp.ne.s32.totalorder %s183, %s185
      %p192 = scmp.eq.s32.totalorder %s25, 1
      %p193 = por %p191, %p192
      %p194 = scmp.ne.s32.totalorder %s185, %s186
      %p195 = scmp.eq.s32.totalorder %s25, 0
      %p196 = por %p194, %p195
      %p197 = scmp.ne.s32.totalorder %s185, %s186
      %p198 = scmp.eq.s32.totalorder %s26, 1
      %p199 = por %p197, %p198
      %p201 = scmp.ne.s32.totalorder %s186, %s200
      %p202 = scmp.eq.s32.totalorder %s26, 0
      %p203 = por %p201, %p202
      %s205 = sadd.s32 %s204, 1
      %p208 = scmp.eq.s32.totalorder %s20, 1
      %p209 = scmp.ne.s32.totalorder %s204, %s206
      %p210 = scmp.eq.s32.totalorder %s20, 0
      %p211 = por %p209, %p210
      %p212 = scmp.ne.s32.totalorder %s204, %s206
      %p213 = scmp.eq.s32.totalorder %s25, 1
      %p214 = por %p212, %p213
      %p215 = scmp.ne.s32.totalorder %s206, %s207
      %p216 = scmp.eq.s32.totalorder %s25, 0
      %p217 = por %p215, %p216
      %p218 = scmp.ne.s32.totalorder %s206, %s207
      %p219 = scmp.eq.s32.totalorder %s26, 1
      %p220 = por %p218, %p219
      %p222 = scmp.ne.s32.totalorder %s207, %s221
      %p223 = scmp.eq.s32.totalorder %s26, 0
      %p224 = por %p222, %p223
      %s226 = sadd.s32 %s225, 1
      %p229 = scmp.eq.s32.totalorder %s20, 1
      %p230 = scmp.ne.s32.totalorder %s225, %s227
      %p231 = scmp.eq.s32.totalorder %s20, 0
      %p232 = por %p230, %p231
      %p233 = scmp.ne.s32.totalorder %s225, %s227
      %p234 = scmp.eq.s32.totalorder %s25, 1
      %p235 = por %p233, %p234
      %p236 = scmp.ne.s32.totalorder %s227, %s228
      %p237 = scmp.eq.s32.totalorder %s25, 0
      %p238 = por %p236, %p237
      %p239 = scmp.ne.s32.totalorder %s227, %s228
      %p240 = scmp.eq.s32.totalorder %s26, 1
      %p241 = por %p239, %p240
      %p243 = scmp.ne.s32.totalorder %s228, %s242
      %p244 = scmp.eq.s32.totalorder %s26, 0
      %p245 = por %p243, %p244
      %s247 = sadd.s32 %s246, 1
      %p250 = scmp.eq.s32.totalorder %s20, 1
      %p251 = scmp.ne.s32.totalorder %s246, %s248
      %p252 = scmp.eq.s32.totalorder %s20, 0
      %p253 = por %p251, %p252
      %p254 = scmp.ne.s32.totalorder %s246, %s248
      %p255 = scmp.eq.s32.totalorder %s25, 1
      %p256 = por %p254, %p255
      %p257 = scmp.ne.s32.totalorder %s248, %s249
      %p258 = scmp.eq.s32.totalorder %s25, 0
      %p259 = por %p257, %p258
      %p260 = scmp.ne.s32.totalorder %s248, %s249
      %p261 = scmp.eq.s32.totalorder %s26, 1
      %p262 = por %p260, %p261
      %p264 = scmp.ne.s32.totalorder %s249, %s263
      %p265 = scmp.eq.s32.totalorder %s26, 0
      %p266 = por %p264, %p265
      %s268 = sadd.s32 %s267, 1
      %p271 = scmp.eq.s32.totalorder %s20, 1
      %p272 = scmp.ne.s32.totalorder %s267, %s269
      %p273 = scmp.eq.s32.totalorder %s20, 0
      %p274 = por %p272, %p273
      %p275 = scmp.ne.s32.totalorder %s267, %s269
      %p276 = scmp.eq.s32.totalorder %s25, 1
      %p277 = por %p275, %p276
      %p278 = scmp.ne.s32.totalorder %s269, %s270
      %p279 = scmp.eq.s32.totalorder %s25, 0
      %p280 = por %p278, %p279
      %p281 = scmp.ne.s32.totalorder %s269, %s270
      %p282 = scmp.eq.s32.totalorder %s26, 1
      %p283 = por %p281, %p282
      %p285 = scmp.ne.s32.totalorder %s270, %s284
      %p286 = scmp.eq.s32.totalorder %s26, 0
      %p287 = por %p285, %p286
      %s288 = ssub.s32 %s27, %s39
      %s289 = ssub.s32 %s28, %s35
      %s290 = sor.u32 %s288, %s289
      %p291 = scmp.eq.s32.totalorder %s290, 0
      %s293 = sadd.s32 %s292, 1
      %s294 = scalar_select %p291, %s292, %s293
      %p297 = pneg %p291
      %p298 = scmp.eq.s32.totalorder %s20, 1
      %p299 = por %p297, %p298
      %p300 = scmp.ne.s32.totalorder %s292, %s295
      %p301 = scmp.eq.s32.totalorder %s20, 0
      %p302 = por %p300, %p301
      %p303 = scmp.ne.s32.totalorder %s292, %s295
      %p304 = scmp.eq.s32.totalorder %s25, 1
      %p305 = por %p303, %p304
      %p306 = scmp.ne.s32.totalorder %s295, %s296
      %p307 = scmp.eq.s32.totalorder %s25, 0
      %p308 = por %p306, %p307
      %p309 = scmp.ne.s32.totalorder %s295, %s296
      %p310 = scmp.eq.s32.totalorder %s26, 1
      %p311 = por %p309, %p310
      %p313 = scmp.ne.s32.totalorder %s296, %s312
      %p314 = scmp.eq.s32.totalorder %s26, 0
      %p315 = por %p313, %p314
      %p316 = scmp.le.s32.totalorder 1, %s20
      %p317 = scmp.lt.s32.totalorder %s20, 3
      %p318 = pnand %p316, %p317
      %p319 = pneg %p318
      // Predicated region
      $region9: #{tpu_custom_call.1} parent=5 // pred_check
        _
      $region10: #{tpu_custom_call.1} parent=5 // pred_check_branch
        %321 = sbr.rel (%p318) target = $region12
      $region11: #{tpu_custom_call.1} parent=5 // pred_region
        %s322 = ssub.s32 %s20, 1
        // Predicated region
        $region13: #{tpu_custom_call.1} parent=11 // pred_check
          %p323 = pneg %p133
        $region14: #{tpu_custom_call.1} parent=11 // pred_check_branch
          %325 = sbr.rel (%p323) target = $region16
        $region15: #{tpu_custom_call.1} parent=11 // pred_region
          _
        $region16: #{tpu_custom_call.1} parent=11 // pred_fallthru
          _
        // Predicated region
        $region17: #{tpu_custom_call.1} parent=11 // pred_check
          %p326 = pneg %p154
        $region18: #{tpu_custom_call.1} parent=11 // pred_check_branch
          %328 = sbr.rel (%p326) target = $region20
        $region19: #{tpu_custom_call.1} parent=11 // pred_region
          _
        $region20: #{tpu_custom_call.1} parent=11 // pred_fallthru
          _
        // Predicated region
        $region21: #{tpu_custom_call.1} parent=11 // pred_check
          %p329 = pneg %p175
        $region22: #{tpu_custom_call.1} parent=11 // pred_check_branch
          %331 = sbr.rel (%p329) target = $region24
        $region23: #{tpu_custom_call.1} parent=11 // pred_region
          _
        $region24: #{tpu_custom_call.1} parent=11 // pred_fallthru
          _
        // Predicated region
        $region25: #{tpu_custom_call.1} parent=11 // pred_check
          %p332 = pneg %p196
        $region26: #{tpu_custom_call.1} parent=11 // pred_check_branch
          %334 = sbr.rel (%p332) target = $region28
        $region27: #{tpu_custom_call.1} parent=11 // pred_region
          _
        $region28: #{tpu_custom_call.1} parent=11 // pred_fallthru
          _
        // Predicated region
        $region29: #{tpu_custom_call.1} parent=11 // pred_check
          %p335 = pneg %p217
        $region30: #{tpu_custom_call.1} parent=11 // pred_check_branch
          %337 = sbr.rel (%p335) target = $region32
        $region31: #{tpu_custom_call.1} parent=11 // pred_region
          _
        $region32: #{tpu_custom_call.1} parent=11 // pred_fallthru
          _
        // Predicated region
        $region33: #{tpu_custom_call.1} parent=11 // pred_check
          %p338 = pneg %p238
        $region34: #{tpu_custom_call.1} parent=11 // pred_check_branch
          %340 = sbr.rel (%p338) target = $region36
        $region35: #{tpu_custom_call.1} parent=11 // pred_region
          _
        $region36: #{tpu_custom_call.1} parent=11 // pred_fallthru
          _
        // Predicated region
        $region37: #{tpu_custom_call.1} parent=11 // pred_check
          %p341 = pneg %p259
        $region38: #{tpu_custom_call.1} parent=11 // pred_check_branch
          %343 = sbr.rel (%p341) target = $region40
        $region39: #{tpu_custom_call.1} parent=11 // pred_region
          _
        $region40: #{tpu_custom_call.1} parent=11 // pred_fallthru
          _
        // Predicated region
        $region41: #{tpu_custom_call.1} parent=11 // pred_check
          %p344 = pneg %p280
        $region42: #{tpu_custom_call.1} parent=11 // pred_check_branch
          %346 = sbr.rel (%p344) target = $region44
        $region43: #{tpu_custom_call.1} parent=11 // pred_region
          _
        $region44: #{tpu_custom_call.1} parent=11 // pred_fallthru
          _
      $region12: #{tpu_custom_call.1} parent=5 // pred_fallthru
        _
      %p347 = scmp.lt.s32.totalorder %s20, 2
      // Predicated region
      $region45: #{tpu_custom_call.1} parent=5 // pred_check
        %p348 = pneg %p347
      $region46: #{tpu_custom_call.1} parent=5 // pred_check_branch
        %350 = sbr.rel (%p348) target = $region48
      $region47: #{tpu_custom_call.1} parent=5 // pred_region
        // Predicated region
        $region49: #{tpu_custom_call.1} parent=47 // pred_check
          %p351 = pneg %p54
        $region50: #{tpu_custom_call.1} parent=47 // pred_check_branch
          %353 = sbr.rel (%p351) target = $region52
        $region51: #{tpu_custom_call.1} parent=47 // pred_region
          %p354 = scmp.lt.s32.totalorder %s27, 1
          %s355 = scalar_select %p354, %s27, 1
          %p356 = scmp.lt.s32.totalorder %s28, 0
          %s357 = scalar_select %p356, %s28, 0
          %s358 = sadd.s32 %s357, %s355
          %s359 = smul.addr %s358, 8
          %s360 = scalar_lea.vmem %s0, %s359
        $region52: #{tpu_custom_call.1} parent=47 // pred_fallthru
          _
        // Predicated region
        $region53: #{tpu_custom_call.1} parent=47 // pred_check
          %p361 = pneg %p80
        $region54: #{tpu_custom_call.1} parent=47 // pred_check_branch
          %363 = sbr.rel (%p361) target = $region56
        $region55: #{tpu_custom_call.1} parent=47 // pred_region
          %p364 = scmp.lt.s32.totalorder %s27, 1
          %s365 = scalar_select %p364, %s27, 1
          %s366 = smul.addr %s365, 8
          %s367 = scalar_lea.vmem %s1, %s366
        $region56: #{tpu_custom_call.1} parent=47 // pred_fallthru
          _
        // Predicated region
        $region57: #{tpu_custom_call.1} parent=47 // pred_check
          %p368 = pneg %p106
        $region58: #{tpu_custom_call.1} parent=47 // pred_check_branch
          %370 = sbr.rel (%p368) target = $region60
        $region59: #{tpu_custom_call.1} parent=47 // pred_region
          %p371 = scmp.lt.s32.totalorder %s27, 1
          %s372 = scalar_select %p371, %s27, 1
          %s373 = smul.addr %s372, 8
          %s374 = scalar_lea.vmem %s2, %s373
        $region60: #{tpu_custom_call.1} parent=47 // pred_fallthru
          _
      $region48: #{tpu_custom_call.1} parent=5 // pred_fallthru
        _
      %p375 = scmp.le.s32.totalorder 1, %s20
      %p376 = scmp.lt.s32.totalorder %s20, 3
      %p377 = pnand %p375, %p376
      %p378 = pneg %p377
      // Predicated region
      $region61: #{tpu_custom_call.1} parent=5 // pred_check
        _
      $region62: #{tpu_custom_call.1} parent=5 // pred_check_branch
        %380 = sbr.rel (%p377) target = $region64
      $region63: #{tpu_custom_call.1} parent=5 // pred_region
        %s381 = ssub.s32 %s20, 1
        %p382 = scmp.lt.s32.totalorder %s29, 1
        %s383 = scalar_select %p382, %s29, 1
        %p384 = scmp.lt.s32.totalorder %s30, 0
        %s385 = scalar_select %p384, %s30, 0
        %s386 = sadd.s32 %s385, %s383
        %s387 = smul.addr %s386, 8
        %s388 = scalar_lea.vmem %s0, %s387
        %p389 = pneg %p60
        %p390 = pneg %p57
        %p391 = scmp.lt.s32.totalorder %s29, 1
        %s392 = scalar_select %p391, %s29, 1
        %s393 = smul.addr %s392, 8
        %s394 = scalar_lea.vmem %s1, %s393
        %p395 = pneg %p86
        %p396 = pneg %p83
        %p397 = scmp.lt.s32.totalorder %s29, 1
        %s398 = scalar_select %p397, %s29, 1
        %s399 = smul.addr %s398, 8
        %s400 = scalar_lea.vmem %s2, %s399
        %p401 = pneg %p112
        %p402 = pneg %p109
        %p403 = pneg %p133
        %p404 = pneg %p130
        %p405 = pneg %p154
        %p406 = pneg %p151
        %p407 = pneg %p175
        %p408 = pneg %p172
        %p409 = pneg %p196
        %p410 = pneg %p193
        %p411 = pneg %p217
        %p412 = pneg %p214
        %p413 = pneg %p238
        %p414 = pneg %p235
        %p415 = pneg %p259
        %p416 = pneg %p256
        %p417 = pneg %p280
        %p418 = pneg %p277
        %p419 = pneg %p308
        %p420 = pneg %p305
        %s421 = sand.u32 %s295, 1
        %s422 = scalar_lea.sflag [#allocation6], %s421
        %s423 = sand.u32 %s295, 1
        %s424 = smul.addr %s423, 8
        %s425 = scalar_lea.vmem [#allocation5], %s424
        %p426 = scmp.lt.s32.totalorder %s29, 1
        %s427 = scalar_select %p426, %s29, 1
        %p428 = scmp.lt.s32.totalorder %s30, 0
        %s429 = scalar_select %p428, %s30, 0
        %s430 = sadd.s32 %s429, %s427
        %s431 = smul.addr %s430, 8
        %s432 = scalar_lea.vmem %s0, %s431
        %p433 = scmp.lt.s32.totalorder %s29, 1
        %s434 = scalar_select %p433, %s29, 1
        %s435 = smul.addr %s434, 8
        %s436 = scalar_lea.vmem %s1, %s435
        %p437 = scmp.lt.s32.totalorder %s29, 1
        %s438 = scalar_select %p437, %s29, 1
        %s439 = smul.addr %s438, 8
        %s440 = scalar_lea.vmem %s2, %s439
        %p441 = scmp.eq.s32.totalorder %s30, 0
        // Predicated region
        $region65: #{tpu_custom_call.1} parent=63 // pred_check
          %p442 = pneg %p441
        $region66: #{tpu_custom_call.1} parent=63 // pred_check_branch
          %444 = sbr.rel (%p442) target = $region68
        $region67: #{tpu_custom_call.1} parent=63 // pred_region
          %v445 = vld [vmem:[%s436] sm:$0xff]
          %v446 = vld [vmem:[%s440] sm:$0xff]
          %v447 = vld [vmem:[%s5] sm:$0xff]
          %v448 = vld [vmem:[%s5 + $0x8] sm:$0xff]
          %v449 = vld [vmem:[%s5 + $0x10] sm:$0xff]
          %v450 = vld [vmem:[%s5 + $0x18] sm:$0xff]
          %v451 = vld [vmem:[%s6] sm:$0x1]
          %v453 = vlaneseq
          %v454 = vshrl.u32 %v453, 7
          %v455 = vsub.s32 0, %v454
          %v456 = vrot.slane %v451, %v455
          %vm458 = vcmask 261120
          %v460 = vsel %vm458, %v445, 0
          %462 = vmatprep.subr.mxu0 0.0
          %463 = vmatpush1.msra.mxu0 0.0
          %464 = vmatprep.subr.mxu0 0.0
          %465 = vmatpush1.msra.mxu0 0.0
          %466 = vmatprep.subr.mxu0 0.0
          %467 = vmatpush1.msra.mxu0 0.0
          %468 = vmatprep.subr.mxu0 0.0
          %469 = vmatpush1.msra.mxu0 0.0
          %470 = vmatprep.subr.mxu0 0.0
          %471 = vmatpush1.msra.mxu0 0.0
          %472 = vmatprep.subr.mxu0 0.0
          %473 = vmatpush1.msra.mxu0 0.0
          %474 = vmatprep.subr.mxu0 0.0
          %475 = vmatpush1.msra.mxu0 0.0
          %476 = vmatprep.subr.mxu0 0.0
          %477 = vmatpush1.msra.mxu0 0.0
          %478 = vmatprep.subr.mxu0 0.0
          %479 = vmatpush1.msra.mxu0 0.0
          %480 = vmatprep.subr.mxu0 0.0
          %481 = vmatpush1.msra.mxu0 0.0
          %482 = vmatprep.subr.mxu0 0.0
          %483 = vmatpush1.msra.mxu0 0.0
          %484 = vmatprep.subr.mxu0 0.0
          %485 = vmatpush1.msra.mxu0 0.0
          %486 = vmatprep.subr.mxu0 0.0
          %487 = vmatpush1.msra.mxu0 %v450
          %488 = vmatprep.subr.mxu0 0.0
          %489 = vmatpush1.msra.mxu0 %v449
          %490 = vmatprep.subr.mxu0 0.0
          %491 = vmatpush1.msra.mxu0 %v448
          %492 = vmatprep.subr.mxu0 0.0
          %493 = vmatpush1.msra.mxu0 %v447
          %494 = vmatprep.subr.mxu0 0.0
          %495 = vmatpush2.msra.mxu0 0.0
          %496 = vmatprep.subr.mxu0 0.0
          %497 = vmatpush2.msra.mxu0 0.0
          %498 = vmatprep.subr.mxu0 0.0
          %499 = vmatpush2.msra.mxu0 0.0
          %500 = vmatprep.subr.mxu0 0.0
          %501 = vmatpush2.msra.mxu0 0.0
          %502 = vmatprep.subr.mxu0 0.0
          %503 = vmatpush2.msra.mxu0 0.0
          %504 = vmatprep.subr.mxu0 0.0
          %505 = vmatpush2.msra.mxu0 0.0
          %506 = vmatprep.subr.mxu0 0.0
          %507 = vmatpush2.msra.mxu0 0.0
          %508 = vmatprep.subr.mxu0 0.0
          %509 = vmatpush2.msra.mxu0 0.0
          %510 = vmatprep.subr.mxu0 0.0
          %511 = vmatpush2.msra.mxu0 0.0
          %512 = vmatprep.subr.mxu0 0.0
          %513 = vmatpush2.msra.mxu0 0.0
          %514 = vmatprep.subr.mxu0 0.0
          %515 = vmatpush2.msra.mxu0 0.0
          %516 = vmatprep.subr.mxu0 0.0
          %517 = vmatpush2.msra.mxu0 0.0
          %518 = vmatprep.subr.mxu0 0.0
          %519 = vmatpush2.msra.mxu0 0.0
          %520 = vmatprep.subr.mxu0 0.0
          %521 = vmatpush2.msra.mxu0 0.0
          %522 = vmatprep.subr.mxu0 0.0
          %523 = vmatpush2.msra.mxu0 0.0
          %524 = vmatprep.subr.mxu0 0.0
          %525 = vmatpush2.msra.mxu0 0.0
          %526 = vmatprep.mubr.f32.mxu0 0.0
          %527 = vmatmul.mubr.f32.gmra.mxu0 %v460
          %v528 = vpop.f32.mrf.mxu0
          %v529 = vadd.f32 %v456, %v528
          %v530 = vpop.f32.mrf.mxu0
          %531 = vdwg.mxu0
          %v532 = vld [vmem:[%s7] sm:$0xff]
          %v533 = vld [vmem:[%s7 + $0x8] sm:$0xff]
          %v534 = vld [vmem:[%s7 + $0x10] sm:$0xff]
          %v535 = vld [vmem:[%s7 + $0x18] sm:$0xff]
          %v536 = vld [vmem:[%s8] sm:$0x1]
          %v538 = vlaneseq
          %v539 = vshrl.u32 %v538, 7
          %v540 = vsub.s32 0, %v539
          %v541 = vrot.slane %v536, %v540
          %v544 = vsel %vm458, %v446, 0
          %546 = vmatprep.subr.mxu0 0.0
          %547 = vmatpush1.msra.mxu0 0.0
          %548 = vmatprep.subr.mxu0 0.0
          %549 = vmatpush1.msra.mxu0 0.0
          %550 = vmatprep.subr.mxu0 0.0
          %551 = vmatpush1.msra.mxu0 0.0
          %552 = vmatprep.subr.mxu0 0.0
          %553 = vmatpush1.msra.mxu0 0.0
          %554 = vmatprep.subr.mxu0 0.0
          %555 = vmatpush1.msra.mxu0 0.0
          %556 = vmatprep.subr.mxu0 0.0
          %557 = vmatpush1.msra.mxu0 0.0
          %558 = vmatprep.subr.mxu0 0.0
          %559 = vmatpush1.msra.mxu0 0.0
          %560 = vmatprep.subr.mxu0 0.0
          %561 = vmatpush1.msra.mxu0 0.0
          %562 = vmatprep.subr.mxu0 0.0
          %563 = vmatpush1.msra.mxu0 0.0
          %564 = vmatprep.subr.mxu0 0.0
          %565 = vmatpush1.msra.mxu0 0.0
          %566 = vmatprep.subr.mxu0 0.0
          %567 = vmatpush1.msra.mxu0 0.0
          %568 = vmatprep.subr.mxu0 0.0
          %569 = vmatpush1.msra.mxu0 0.0
          %570 = vmatprep.subr.mxu0 0.0
          %571 = vmatpush1.msra.mxu0 %v535
          %572 = vmatprep.subr.mxu0 0.0
          %573 = vmatpush1.msra.mxu0 %v534
          %574 = vmatprep.subr.mxu0 0.0
          %575 = vmatpush1.msra.mxu0 %v533
          %576 = vmatprep.subr.mxu0 0.0
          %577 = vmatpush1.msra.mxu0 %v532
          %578 = vmatprep.subr.mxu0 0.0
          %579 = vmatpush2.msra.mxu0 0.0
          %580 = vmatprep.subr.mxu0 0.0
          %581 = vmatpush2.msra.mxu0 0.0
          %582 = vmatprep.subr.mxu0 0.0
          %583 = vmatpush2.msra.mxu0 0.0
          %584 = vmatprep.subr.mxu0 0.0
          %585 = vmatpush2.msra.mxu0 0.0
          %586 = vmatprep.subr.mxu0 0.0
          %587 = vmatpush2.msra.mxu0 0.0
          %588 = vmatprep.subr.mxu0 0.0
          %589 = vmatpush2.msra.mxu0 0.0
          %590 = vmatprep.subr.mxu0 0.0
          %591 = vmatpush2.msra.mxu0 0.0
          %592 = vmatprep.subr.mxu0 0.0
          %593 = vmatpush2.msra.mxu0 0.0
          %594 = vmatprep.subr.mxu0 0.0
          %595 = vmatpush2.msra.mxu0 0.0
          %596 = vmatprep.subr.mxu0 0.0
          %597 = vmatpush2.msra.mxu0 0.0
          %598 = vmatprep.subr.mxu0 0.0
          %599 = vmatpush2.msra.mxu0 0.0
          %600 = vmatprep.subr.mxu0 0.0
          %601 = vmatpush2.msra.mxu0 0.0
          %602 = vmatprep.subr.mxu0 0.0
          %603 = vmatpush2.msra.mxu0 0.0
          %604 = vmatprep.subr.mxu0 0.0
          %605 = vmatpush2.msra.mxu0 0.0
          %606 = vmatprep.subr.mxu0 0.0
          %607 = vmatpush2.msra.mxu0 0.0
          %608 = vmatprep.subr.mxu0 0.0
          %609 = vmatpush2.msra.mxu0 0.0
          %610 = vmatprep.mubr.f32.mxu0 0.0
          %611 = vmatmul.mubr.f32.gmra.mxu0 %v544
          %v612 = vpop.f32.mrf.mxu0
          %v613 = vadd.f32 %v541, %v612
          %v614 = vpop.f32.mrf.mxu0
          %615 = vdwg.mxu0
          %vm616 = vcmask 64512
          %617 = vst.msk [vmem:[#allocation2] sm:$0xff] %vm616, %v529
          %618 = vst.msk [vmem:[#allocation3] sm:$0xff] %vm616, %v613
          %s619 = scalar_lea.vmem %s5, 32
          %v620 = vld [vmem:[%s619] sm:$0xff]
          %v621 = vld [vmem:[%s619 + $0x8] sm:$0xff]
          %v622 = vld [vmem:[%s619 + $0x10] sm:$0xff]
          %v623 = vld [vmem:[%s619 + $0x18] sm:$0xff]
          %s624 = scalar_lea.vmem %s6, 1
          %v625 = vld [vmem:[%s624] sm:$0x1]
          %v627 = vlaneseq
          %v628 = vshrl.u32 %v627, 7
          %v629 = vsub.s32 0, %v628
          %v630 = vrot.slane %v625, %v629
          %632 = vmatprep.subr.mxu0 0.0
          %633 = vmatpush1.msra.mxu0 0.0
          %634 = vmatprep.subr.mxu0 0.0
          %635 = vmatpush1.msra.mxu0 0.0
          %636 = vmatprep.subr.mxu0 0.0
          %637 = vmatpush1.msra.mxu0 0.0
          %638 = vmatprep.subr.mxu0 0.0
          %639 = vmatpush1.msra.mxu0 0.0
          %640 = vmatprep.subr.mxu0 0.0
          %641 = vmatpush1.msra.mxu0 0.0
          %642 = vmatprep.subr.mxu0 0.0
          %643 = vmatpush1.msra.mxu0 0.0
          %644 = vmatprep.subr.mxu0 0.0
          %645 = vmatpush1.msra.mxu0 0.0
          %646 = vmatprep.subr.mxu0 0.0
          %647 = vmatpush1.msra.mxu0 0.0
          %648 = vmatprep.subr.mxu0 0.0
          %649 = vmatpush1.msra.mxu0 0.0
          %650 = vmatprep.subr.mxu0 0.0
          %651 = vmatpush1.msra.mxu0 0.0
          %652 = vmatprep.subr.mxu0 0.0
          %653 = vmatpush1.msra.mxu0 0.0
          %654 = vmatprep.subr.mxu0 0.0
          %655 = vmatpush1.msra.mxu0 0.0
          %656 = vmatprep.subr.mxu0 0.0
          %657 = vmatpush1.msra.mxu0 %v623
          %658 = vmatprep.subr.mxu0 0.0
          %659 = vmatpush1.msra.mxu0 %v622
          %660 = vmatprep.subr.mxu0 0.0
          %661 = vmatpush1.msra.mxu0 %v621
          %662 = vmatprep.subr.mxu0 0.0
          %663 = vmatpush1.msra.mxu0 %v620
          %664 = vmatprep.subr.mxu0 0.0
          %665 = vmatpush2.msra.mxu0 0.0
          %666 = vmatprep.subr.mxu0 0.0
          %667 = vmatpush2.msra.mxu0 0.0
          %668 = vmatprep.subr.mxu0 0.0
          %669 = vmatpush2.msra.mxu0 0.0
          %670 = vmatprep.subr.mxu0 0.0
          %671 = vmatpush2.msra.mxu0 0.0
          %672 = vmatprep.subr.mxu0 0.0
          %673 = vmatpush2.msra.mxu0 0.0
          %674 = vmatprep.subr.mxu0 0.0
          %675 = vmatpush2.msra.mxu0 0.0
          %676 = vmatprep.subr.mxu0 0.0
          %677 = vmatpush2.msra.mxu0 0.0
          %678 = vmatprep.subr.mxu0 0.0
          %679 = vmatpush2.msra.mxu0 0.0
          %680 = vmatprep.subr.mxu0 0.0
          %681 = vmatpush2.msra.mxu0 0.0
          %682 = vmatprep.subr.mxu0 0.0
          %683 = vmatpush2.msra.mxu0 0.0
          %684 = vmatprep.subr.mxu0 0.0
          %685 = vmatpush2.msra.mxu0 0.0
          %686 = vmatprep.subr.mxu0 0.0
          %687 = vmatpush2.msra.mxu0 0.0
          %688 = vmatprep.subr.mxu0 0.0
          %689 = vmatpush2.msra.mxu0 0.0
          %690 = vmatprep.subr.mxu0 0.0
          %691 = vmatpush2.msra.mxu0 0.0
          %692 = vmatprep.subr.mxu0 0.0
          %693 = vmatpush2.msra.mxu0 0.0
          %694 = vmatprep.subr.mxu0 0.0
          %695 = vmatpush2.msra.mxu0 0.0
          %696 = vmatprep.mubr.f32.mxu0 0.0
          %697 = vmatmul.mubr.f32.gmra.mxu0 %v460
          %v698 = vpop.f32.mrf.mxu0
          %v699 = vadd.f32 %v630, %v698
          %v700 = vpop.f32.mrf.mxu0
          %701 = vdwg.mxu0
          %s702 = scalar_lea.vmem %s7, 32
          %v703 = vld [vmem:[%s702] sm:$0xff]
          %v704 = vld [vmem:[%s702 + $0x8] sm:$0xff]
          %v705 = vld [vmem:[%s702 + $0x10] sm:$0xff]
          %v706 = vld [vmem:[%s702 + $0x18] sm:$0xff]
          %s707 = scalar_lea.vmem %s8, 1
          %v708 = vld [vmem:[%s707] sm:$0x1]
          %v710 = vlaneseq
          %v711 = vshrl.u32 %v710, 7
          %v712 = vsub.s32 0, %v711
          %v713 = vrot.slane %v708, %v712
          %715 = vmatprep.subr.mxu0 0.0
          %716 = vmatpush1.msra.mxu0 0.0
          %717 = vmatprep.subr.mxu0 0.0
          %718 = vmatpush1.msra.mxu0 0.0
          %719 = vmatprep.subr.mxu0 0.0
          %720 = vmatpush1.msra.mxu0 0.0
          %721 = vmatprep.subr.mxu0 0.0
          %722 = vmatpush1.msra.mxu0 0.0
          %723 = vmatprep.subr.mxu0 0.0
          %724 = vmatpush1.msra.mxu0 0.0
          %725 = vmatprep.subr.mxu0 0.0
          %726 = vmatpush1.msra.mxu0 0.0
          %727 = vmatprep.subr.mxu0 0.0
          %728 = vmatpush1.msra.mxu0 0.0
          %729 = vmatprep.subr.mxu0 0.0
          %730 = vmatpush1.msra.mxu0 0.0
          %731 = vmatprep.subr.mxu0 0.0
          %732 = vmatpush1.msra.mxu0 0.0
          %733 = vmatprep.subr.mxu0 0.0
          %734 = vmatpush1.msra.mxu0 0.0
          %735 = vmatprep.subr.mxu0 0.0
          %736 = vmatpush1.msra.mxu0 0.0
          %737 = vmatprep.subr.mxu0 0.0
          %738 = vmatpush1.msra.mxu0 0.0
          %739 = vmatprep.subr.mxu0 0.0
          %740 = vmatpush1.msra.mxu0 %v706
          %741 = vmatprep.subr.mxu0 0.0
          %742 = vmatpush1.msra.mxu0 %v705
          %743 = vmatprep.subr.mxu0 0.0
          %744 = vmatpush1.msra.mxu0 %v704
          %745 = vmatprep.subr.mxu0 0.0
          %746 = vmatpush1.msra.mxu0 %v703
          %747 = vmatprep.subr.mxu0 0.0
          %748 = vmatpush2.msra.mxu0 0.0
          %749 = vmatprep.subr.mxu0 0.0
          %750 = vmatpush2.msra.mxu0 0.0
          %751 = vmatprep.subr.mxu0 0.0
          %752 = vmatpush2.msra.mxu0 0.0
          %753 = vmatprep.subr.mxu0 0.0
          %754 = vmatpush2.msra.mxu0 0.0
          %755 = vmatprep.subr.mxu0 0.0
          %756 = vmatpush2.msra.mxu0 0.0
          %757 = vmatprep.subr.mxu0 0.0
          %758 = vmatpush2.msra.mxu0 0.0
          %759 = vmatprep.subr.mxu0 0.0
          %760 = vmatpush2.msra.mxu0 0.0
          %761 = vmatprep.subr.mxu0 0.0
          %762 = vmatpush2.msra.mxu0 0.0
          %763 = vmatprep.subr.mxu0 0.0
          %764 = vmatpush2.msra.mxu0 0.0
          %765 = vmatprep.subr.mxu0 0.0
          %766 = vmatpush2.msra.mxu0 0.0
          %767 = vmatprep.subr.mxu0 0.0
          %768 = vmatpush2.msra.mxu0 0.0
          %769 = vmatprep.subr.mxu0 0.0
          %770 = vmatpush2.msra.mxu0 0.0
          %771 = vmatprep.subr.mxu0 0.0
          %772 = vmatpush2.msra.mxu0 0.0
          %773 = vmatprep.subr.mxu0 0.0
          %774 = vmatpush2.msra.mxu0 0.0
          %775 = vmatprep.subr.mxu0 0.0
          %776 = vmatpush2.msra.mxu0 0.0
          %777 = vmatprep.subr.mxu0 0.0
          %778 = vmatpush2.msra.mxu0 0.0
          %779 = vmatprep.mubr.f32.mxu0 0.0
          %780 = vmatmul.mubr.f32.gmra.mxu0 %v544
          %v781 = vpop.f32.mrf.mxu0
          %v782 = vadd.f32 %v713, %v781
          %v783 = vpop.f32.mrf.mxu0
          %784 = vdwg.mxu0
          %s785 = scalar_lea.vmem [#allocation2], 8
          %786 = vst.msk [vmem:[%s785] sm:$0xff] %vm616, %v699
          %s787 = scalar_lea.vmem [#allocation3], 8
          %788 = vst.msk [vmem:[%s787] sm:$0xff] %vm616, %v782
          %s789 = scalar_lea.vmem %s5, 64
          %v790 = vld [vmem:[%s789] sm:$0xff]
          %v791 = vld [vmem:[%s789 + $0x8] sm:$0xff]
          %v792 = vld [vmem:[%s789 + $0x10] sm:$0xff]
          %v793 = vld [vmem:[%s789 + $0x18] sm:$0xff]
          %s794 = scalar_lea.vmem %s6, 2
          %v795 = vld [vmem:[%s794] sm:$0x1]
          %v797 = vlaneseq
          %v798 = vshrl.u32 %v797, 7
          %v799 = vsub.s32 0, %v798
          %v800 = vrot.slane %v795, %v799
          %802 = vmatprep.subr.mxu0 0.0
          %803 = vmatpush1.msra.mxu0 0.0
          %804 = vmatprep.subr.mxu0 0.0
          %805 = vmatpush1.msra.mxu0 0.0
          %806 = vmatprep.subr.mxu0 0.0
          %807 = vmatpush1.msra.mxu0 0.0
          %808 = vmatprep.subr.mxu0 0.0
          %809 = vmatpush1.msra.mxu0 0.0
          %810 = vmatprep.subr.mxu0 0.0
          %811 = vmatpush1.msra.mxu0 0.0
          %812 = vmatprep.subr.mxu0 0.0
          %813 = vmatpush1.msra.mxu0 0.0
          %814 = vmatprep.subr.mxu0 0.0
          %815 = vmatpush1.msra.mxu0 0.0
          %816 = vmatprep.subr.mxu0 0.0
          %817 = vmatpush1.msra.mxu0 0.0
          %818 = vmatprep.subr.mxu0 0.0
          %819 = vmatpush1.msra.mxu0 0.0
          %820 = vmatprep.subr.mxu0 0.0
          %821 = vmatpush1.msra.mxu0 0.0
          %822 = vmatprep.subr.mxu0 0.0
          %823 = vmatpush1.msra.mxu0 0.0
          %824 = vmatprep.subr.mxu0 0.0
          %825 = vmatpush1.msra.mxu0 0.0
          %826 = vmatprep.subr.mxu0 0.0
          %827 = vmatpush1.msra.mxu0 %v793
          %828 = vmatprep.subr.mxu0 0.0
          %829 = vmatpush1.msra.mxu0 %v792
          %830 = vmatprep.subr.mxu0 0.0
          %831 = vmatpush1.msra.mxu0 %v791
          %832 = vmatprep.subr.mxu0 0.0
          %833 = vmatpush1.msra.mxu0 %v790
          %834 = vmatprep.subr.mxu0 0.0
          %835 = vmatpush2.msra.mxu0 0.0
          %836 = vmatprep.subr.mxu0 0.0
          %837 = vmatpush2.msra.mxu0 0.0
          %838 = vmatprep.subr.mxu0 0.0
          %839 = vmatpush2.msra.mxu0 0.0
          %840 = vmatprep.subr.mxu0 0.0
          %841 = vmatpush2.msra.mxu0 0.0
          %842 = vmatprep.subr.mxu0 0.0
          %843 = vmatpush2.msra.mxu0 0.0
          %844 = vmatprep.subr.mxu0 0.0
          %845 = vmatpush2.msra.mxu0 0.0
          %846 = vmatprep.subr.mxu0 0.0
          %847 = vmatpush2.msra.mxu0 0.0
          %848 = vmatprep.subr.mxu0 0.0
          %849 = vmatpush2.msra.mxu0 0.0
          %850 = vmatprep.subr.mxu0 0.0
          %851 = vmatpush2.msra.mxu0 0.0
          %852 = vmatprep.subr.mxu0 0.0
          %853 = vmatpush2.msra.mxu0 0.0
          %854 = vmatprep.subr.mxu0 0.0
          %855 = vmatpush2.msra.mxu0 0.0
          %856 = vmatprep.subr.mxu0 0.0
          %857 = vmatpush2.msra.mxu0 0.0
          %858 = vmatprep.subr.mxu0 0.0
          %859 = vmatpush2.msra.mxu0 0.0
          %860 = vmatprep.subr.mxu0 0.0
          %861 = vmatpush2.msra.mxu0 0.0
          %862 = vmatprep.subr.mxu0 0.0
          %863 = vmatpush2.msra.mxu0 0.0
          %864 = vmatprep.subr.mxu0 0.0
          %865 = vmatpush2.msra.mxu0 0.0
          %866 = vmatprep.mubr.f32.mxu0 0.0
          %867 = vmatmul.mubr.f32.gmra.mxu0 %v460
          %v868 = vpop.f32.mrf.mxu0
          %v869 = vadd.f32 %v800, %v868
          %v870 = vpop.f32.mrf.mxu0
          %871 = vdwg.mxu0
          %s872 = scalar_lea.vmem %s7, 64
          %v873 = vld [vmem:[%s872] sm:$0xff]
          %v874 = vld [vmem:[%s872 + $0x8] sm:$0xff]
          %v875 = vld [vmem:[%s872 + $0x10] sm:$0xff]
          %v876 = vld [vmem:[%s872 + $0x18] sm:$0xff]
          %s877 = scalar_lea.vmem %s8, 2
          %v878 = vld [vmem:[%s877] sm:$0x1]
          %v880 = vlaneseq
          %v881 = vshrl.u32 %v880, 7
          %v882 = vsub.s32 0, %v881
          %v883 = vrot.slane %v878, %v882
          %885 = vmatprep.subr.mxu0 0.0
          %886 = vmatpush1.msra.mxu0 0.0
          %887 = vmatprep.subr.mxu0 0.0
          %888 = vmatpush1.msra.mxu0 0.0
          %889 = vmatprep.subr.mxu0 0.0
          %890 = vmatpush1.msra.mxu0 0.0
          %891 = vmatprep.subr.mxu0 0.0
          %892 = vmatpush1.msra.mxu0 0.0
          %893 = vmatprep.subr.mxu0 0.0
          %894 = vmatpush1.msra.mxu0 0.0
          %895 = vmatprep.subr.mxu0 0.0
          %896 = vmatpush1.msra.mxu0 0.0
          %897 = vmatprep.subr.mxu0 0.0
          %898 = vmatpush1.msra.mxu0 0.0
          %899 = vmatprep.subr.mxu0 0.0
          %900 = vmatpush1.msra.mxu0 0.0
          %901 = vmatprep.subr.mxu0 0.0
          %902 = vmatpush1.msra.mxu0 0.0
          %903 = vmatprep.subr.mxu0 0.0
          %904 = vmatpush1.msra.mxu0 0.0
          %905 = vmatprep.subr.mxu0 0.0
          %906 = vmatpush1.msra.mxu0 0.0
          %907 = vmatprep.subr.mxu0 0.0
          %908 = vmatpush1.msra.mxu0 0.0
          %909 = vmatprep.subr.mxu0 0.0
          %910 = vmatpush1.msra.mxu0 %v876
          %911 = vmatprep.subr.mxu0 0.0
          %912 = vmatpush1.msra.mxu0 %v875
          %913 = vmatprep.subr.mxu0 0.0
          %914 = vmatpush1.msra.mxu0 %v874
          %915 = vmatprep.subr.mxu0 0.0
          %916 = vmatpush1.msra.mxu0 %v873
          %917 = vmatprep.subr.mxu0 0.0
          %918 = vmatpush2.msra.mxu0 0.0
          %919 = vmatprep.subr.mxu0 0.0
          %920 = vmatpush2.msra.mxu0 0.0
          %921 = vmatprep.subr.mxu0 0.0
          %922 = vmatpush2.msra.mxu0 0.0
          %923 = vmatprep.subr.mxu0 0.0
          %924 = vmatpush2.msra.mxu0 0.0
          %925 = vmatprep.subr.mxu0 0.0
          %926 = vmatpush2.msra.mxu0 0.0
          %927 = vmatprep.subr.mxu0 0.0
          %928 = vmatpush2.msra.mxu0 0.0
          %929 = vmatprep.subr.mxu0 0.0
          %930 = vmatpush2.msra.mxu0 0.0
          %931 = vmatprep.subr.mxu0 0.0
          %932 = vmatpush2.msra.mxu0 0.0
          %933 = vmatprep.subr.mxu0 0.0
          %934 = vmatpush2.msra.mxu0 0.0
          %935 = vmatprep.subr.mxu0 0.0
          %936 = vmatpush2.msra.mxu0 0.0
          %937 = vmatprep.subr.mxu0 0.0
          %938 = vmatpush2.msra.mxu0 0.0
          %939 = vmatprep.subr.mxu0 0.0
          %940 = vmatpush2.msra.mxu0 0.0
          %941 = vmatprep.subr.mxu0 0.0
          %942 = vmatpush2.msra.mxu0 0.0
          %943 = vmatprep.subr.mxu0 0.0
          %944 = vmatpush2.msra.mxu0 0.0
          %945 = vmatprep.subr.mxu0 0.0
          %946 = vmatpush2.msra.mxu0 0.0
          %947 = vmatprep.subr.mxu0 0.0
          %948 = vmatpush2.msra.mxu0 0.0
          %949 = vmatprep.mubr.f32.mxu0 0.0
          %950 = vmatmul.mubr.f32.gmra.mxu0 %v544
          %v951 = vpop.f32.mrf.mxu0
          %v952 = vadd.f32 %v883, %v951
          %v953 = vpop.f32.mrf.mxu0
          %954 = vdwg.mxu0
          %s955 = scalar_lea.vmem [#allocation2], 16
          %956 = vst.msk [vmem:[%s955] sm:$0xff] %vm616, %v869
          %s957 = scalar_lea.vmem [#allocation3], 16
          %958 = vst.msk [vmem:[%s957] sm:$0xff] %vm616, %v952
          %s959 = scalar_lea.vmem %s5, 96
          %v960 = vld [vmem:[%s959] sm:$0xff]
          %v961 = vld [vmem:[%s959 + $0x8] sm:$0xff]
          %v962 = vld [vmem:[%s959 + $0x10] sm:$0xff]
          %v963 = vld [vmem:[%s959 + $0x18] sm:$0xff]
          %s964 = scalar_lea.vmem %s6, 3
          %v965 = vld [vmem:[%s964] sm:$0x1]
          %v967 = vlaneseq
          %v968 = vshrl.u32 %v967, 7
          %v969 = vsub.s32 0, %v968
          %v970 = vrot.slane %v965, %v969
          %972 = vmatprep.subr.mxu0 0.0
          %973 = vmatpush1.msra.mxu0 0.0
          %974 = vmatprep.subr.mxu0 0.0
          %975 = vmatpush1.msra.mxu0 0.0
          %976 = vmatprep.subr.mxu0 0.0
          %977 = vmatpush1.msra.mxu0 0.0
          %978 = vmatprep.subr.mxu0 0.0
          %979 = vmatpush1.msra.mxu0 0.0
          %980 = vmatprep.subr.mxu0 0.0
          %981 = vmatpush1.msra.mxu0 0.0
          %982 = vmatprep.subr.mxu0 0.0
          %983 = vmatpush1.msra.mxu0 0.0
          %984 = vmatprep.subr.mxu0 0.0
          %985 = vmatpush1.msra.mxu0 0.0
          %986 = vmatprep.subr.mxu0 0.0
          %987 = vmatpush1.msra.mxu0 0.0
          %988 = vmatprep.subr.mxu0 0.0
          %989 = vmatpush1.msra.mxu0 0.0
          %990 = vmatprep.subr.mxu0 0.0
          %991 = vmatpush1.msra.mxu0 0.0
          %992 = vmatprep.subr.mxu0 0.0
          %993 = vmatpush1.msra.mxu0 0.0
          %994 = vmatprep.subr.mxu0 0.0
          %995 = vmatpush1.msra.mxu0 0.0
          %996 = vmatprep.subr.mxu0 0.0
          %997 = vmatpush1.msra.mxu0 %v963
          %998 = vmatprep.subr.mxu0 0.0
          %999 = vmatpush1.msra.mxu0 %v962
          %1000 = vmatprep.subr.mxu0 0.0
          %1001 = vmatpush1.msra.mxu0 %v961
          %1002 = vmatprep.subr.mxu0 0.0
          %1003 = vmatpush1.msra.mxu0 %v960
          %1004 = vmatprep.subr.mxu0 0.0
          %1005 = vmatpush2.msra.mxu0 0.0
          %1006 = vmatprep.subr.mxu0 0.0
          %1007 = vmatpush2.msra.mxu0 0.0
          %1008 = vmatprep.subr.mxu0 0.0
          %1009 = vmatpush2.msra.mxu0 0.0
          %1010 = vmatprep.subr.mxu0 0.0
          %1011 = vmatpush2.msra.mxu0 0.0
          %1012 = vmatprep.subr.mxu0 0.0
          %1013 = vmatpush2.msra.mxu0 0.0
          %1014 = vmatprep.subr.mxu0 0.0
          %1015 = vmatpush2.msra.mxu0 0.0
          %1016 = vmatprep.subr.mxu0 0.0
          %1017 = vmatpush2.msra.mxu0 0.0
          %1018 = vmatprep.subr.mxu0 0.0
          %1019 = vmatpush2.msra.mxu0 0.0
          %1020 = vmatprep.subr.mxu0 0.0
          %1021 = vmatpush2.msra.mxu0 0.0
          %1022 = vmatprep.subr.mxu0 0.0
          %1023 = vmatpush2.msra.mxu0 0.0
          %1024 = vmatprep.subr.mxu0 0.0
          %1025 = vmatpush2.msra.mxu0 0.0
          %1026 = vmatprep.subr.mxu0 0.0
          %1027 = vmatpush2.msra.mxu0 0.0
          %1028 = vmatprep.subr.mxu0 0.0
          %1029 = vmatpush2.msra.mxu0 0.0
          %1030 = vmatprep.subr.mxu0 0.0
          %1031 = vmatpush2.msra.mxu0 0.0
          %1032 = vmatprep.subr.mxu0 0.0
          %1033 = vmatpush2.msra.mxu0 0.0
          %1034 = vmatprep.subr.mxu0 0.0
          %1035 = vmatpush2.msra.mxu0 0.0
          %1036 = vmatprep.mubr.f32.mxu0 0.0
          %1037 = vmatmul.mubr.f32.gmra.mxu0 %v460
          %v1038 = vpop.f32.mrf.mxu0
          %v1039 = vadd.f32 %v970, %v1038
          %v1040 = vpop.f32.mrf.mxu0
          %1041 = vdwg.mxu0
          %s1042 = scalar_lea.vmem %s7, 96
          %v1043 = vld [vmem:[%s1042] sm:$0xff]
          %v1044 = vld [vmem:[%s1042 + $0x8] sm:$0xff]
          %v1045 = vld [vmem:[%s1042 + $0x10] sm:$0xff]
          %v1046 = vld [vmem:[%s1042 + $0x18] sm:$0xff]
          %s1047 = scalar_lea.vmem %s8, 3
          %v1048 = vld [vmem:[%s1047] sm:$0x1]
          %v1050 = vlaneseq
          %v1051 = vshrl.u32 %v1050, 7
          %v1052 = vsub.s32 0, %v1051
          %v1053 = vrot.slane %v1048, %v1052
          %1055 = vmatprep.subr.mxu0 0.0
          %1056 = vmatpush1.msra.mxu0 0.0
          %1057 = vmatprep.subr.mxu0 0.0
          %1058 = vmatpush1.msra.mxu0 0.0
          %1059 = vmatprep.subr.mxu0 0.0
          %1060 = vmatpush1.msra.mxu0 0.0
          %1061 = vmatprep.subr.mxu0 0.0
          %1062 = vmatpush1.msra.mxu0 0.0
          %1063 = vmatprep.subr.mxu0 0.0
          %1064 = vmatpush1.msra.mxu0 0.0
          %1065 = vmatprep.subr.mxu0 0.0
          %1066 = vmatpush1.msra.mxu0 0.0
          %1067 = vmatprep.subr.mxu0 0.0
          %1068 = vmatpush1.msra.mxu0 0.0
          %1069 = vmatprep.subr.mxu0 0.0
          %1070 = vmatpush1.msra.mxu0 0.0
          %1071 = vmatprep.subr.mxu0 0.0
          %1072 = vmatpush1.msra.mxu0 0.0
          %1073 = vmatprep.subr.mxu0 0.0
          %1074 = vmatpush1.msra.mxu0 0.0
          %1075 = vmatprep.subr.mxu0 0.0
          %1076 = vmatpush1.msra.mxu0 0.0
          %1077 = vmatprep.subr.mxu0 0.0
          %1078 = vmatpush1.msra.mxu0 0.0
          %1079 = vmatprep.subr.mxu0 0.0
          %1080 = vmatpush1.msra.mxu0 %v1046
          %1081 = vmatprep.subr.mxu0 0.0
          %1082 = vmatpush1.msra.mxu0 %v1045
          %1083 = vmatprep.subr.mxu0 0.0
          %1084 = vmatpush1.msra.mxu0 %v1044
          %1085 = vmatprep.subr.mxu0 0.0
          %1086 = vmatpush1.msra.mxu0 %v1043
          %1087 = vmatprep.subr.mxu0 0.0
          %1088 = vmatpush2.msra.mxu0 0.0
          %1089 = vmatprep.subr.mxu0 0.0
          %1090 = vmatpush2.msra.mxu0 0.0
          %1091 = vmatprep.subr.mxu0 0.0
          %1092 = vmatpush2.msra.mxu0 0.0
          %1093 = vmatprep.subr.mxu0 0.0
          %1094 = vmatpush2.msra.mxu0 0.0
          %1095 = vmatprep.subr.mxu0 0.0
          %1096 = vmatpush2.msra.mxu0 0.0
          %1097 = vmatprep.subr.mxu0 0.0
          %1098 = vmatpush2.msra.mxu0 0.0
          %1099 = vmatprep.subr.mxu0 0.0
          %1100 = vmatpush2.msra.mxu0 0.0
          %1101 = vmatprep.subr.mxu0 0.0
          %1102 = vmatpush2.msra.mxu0 0.0
          %1103 = vmatprep.subr.mxu0 0.0
          %1104 = vmatpush2.msra.mxu0 0.0
          %1105 = vmatprep.subr.mxu0 0.0
          %1106 = vmatpush2.msra.mxu0 0.0
          %1107 = vmatprep.subr.mxu0 0.0
          %1108 = vmatpush2.msra.mxu0 0.0
          %1109 = vmatprep.subr.mxu0 0.0
          %1110 = vmatpush2.msra.mxu0 0.0
          %1111 = vmatprep.subr.mxu0 0.0
          %1112 = vmatpush2.msra.mxu0 0.0
          %1113 = vmatprep.subr.mxu0 0.0
          %1114 = vmatpush2.msra.mxu0 0.0
          %1115 = vmatprep.subr.mxu0 0.0
          %1116 = vmatpush2.msra.mxu0 0.0
          %1117 = vmatprep.subr.mxu0 0.0
          %1118 = vmatpush2.msra.mxu0 0.0
          %1119 = vmatprep.mubr.f32.mxu0 0.0
          %1120 = vmatmul.mubr.f32.gmra.mxu0 %v544
          %v1121 = vpop.f32.mrf.mxu0
          %v1122 = vadd.f32 %v1053, %v1121
          %v1123 = vpop.f32.mrf.mxu0
          %1124 = vdwg.mxu0
          %s1125 = scalar_lea.vmem [#allocation2], 24
          %1126 = vst.msk [vmem:[%s1125] sm:$0xff] %vm616, %v1039
          %s1127 = scalar_lea.vmem [#allocation3], 24
          %1128 = vst.msk [vmem:[%s1127] sm:$0xff] %vm616, %v1122
        $region68: #{tpu_custom_call.1} parent=63 // pred_fallthru
          _
        %v1129 = vld [vmem:[%s432] sm:$0xff]
        %v1130 = vld [vmem:[%s3] sm:$0xff]
        %v1131 = vld [vmem:[%s3 + $0x8] sm:$0xff]
        %v1132 = vld [vmem:[%s3 + $0x10] sm:$0xff]
        %v1133 = vld [vmem:[%s3 + $0x18] sm:$0xff]
        %v1134 = vld [vmem:[%s4] sm:$0x1]
        %v1136 = vlaneseq
        %v1137 = vshrl.u32 %v1136, 7
        %v1138 = vsub.s32 0, %v1137
        %v1139 = vrot.slane %v1134, %v1138
        %vm1141 = vcmask 261120
        %v1143 = vsel %vm1141, %v1129, 0
        %1145 = vmatprep.subr.mxu0 0.0
        %1146 = vmatpush1.msra.mxu0 0.0
        %1147 = vmatprep.subr.mxu0 0.0
        %1148 = vmatpush1.msra.mxu0 0.0
        %1149 = vmatprep.subr.mxu0 0.0
        %1150 = vmatpush1.msra.mxu0 0.0
        %1151 = vmatprep.subr.mxu0 0.0
        %1152 = vmatpush1.msra.mxu0 0.0
        %1153 = vmatprep.subr.mxu0 0.0
        %1154 = vmatpush1.msra.mxu0 0.0
        %1155 = vmatprep.subr.mxu0 0.0
        %1156 = vmatpush1.msra.mxu0 0.0
        %1157 = vmatprep.subr.mxu0 0.0
        %1158 = vmatpush1.msra.mxu0 0.0
        %1159 = vmatprep.subr.mxu0 0.0
        %1160 = vmatpush1.msra.mxu0 0.0
        %1161 = vmatprep.subr.mxu0 0.0
        %1162 = vmatpush1.msra.mxu0 0.0
        %1163 = vmatprep.subr.mxu0 0.0
        %1164 = vmatpush1.msra.mxu0 0.0
        %1165 = vmatprep.subr.mxu0 0.0
        %1166 = vmatpush1.msra.mxu0 0.0
        %1167 = vmatprep.subr.mxu0 0.0
        %1168 = vmatpush1.msra.mxu0 0.0
        %1169 = vmatprep.subr.mxu0 0.0
        %1170 = vmatpush1.msra.mxu0 %v1133
        %1171 = vmatprep.subr.mxu0 0.0
        %1172 = vmatpush1.msra.mxu0 %v1132
        %1173 = vmatprep.subr.mxu0 0.0
        %1174 = vmatpush1.msra.mxu0 %v1131
        %1175 = vmatprep.subr.mxu0 0.0
        %1176 = vmatpush1.msra.mxu0 %v1130
        %1177 = vmatprep.subr.mxu0 0.0
        %1178 = vmatpush2.msra.mxu0 0.0
        %1179 = vmatprep.subr.mxu0 0.0
        %1180 = vmatpush2.msra.mxu0 0.0
        %1181 = vmatprep.subr.mxu0 0.0
        %1182 = vmatpush2.msra.mxu0 0.0
        %1183 = vmatprep.subr.mxu0 0.0
        %1184 = vmatpush2.msra.mxu0 0.0
        %1185 = vmatprep.subr.mxu0 0.0
        %1186 = vmatpush2.msra.mxu0 0.0
        %1187 = vmatprep.subr.mxu0 0.0
        %1188 = vmatpush2.msra.mxu0 0.0
        %1189 = vmatprep.subr.mxu0 0.0
        %1190 = vmatpush2.msra.mxu0 0.0
        %1191 = vmatprep.subr.mxu0 0.0
        %1192 = vmatpush2.msra.mxu0 0.0
        %1193 = vmatprep.subr.mxu0 0.0
        %1194 = vmatpush2.msra.mxu0 0.0
        %1195 = vmatprep.subr.mxu0 0.0
        %1196 = vmatpush2.msra.mxu0 0.0
        %1197 = vmatprep.subr.mxu0 0.0
        %1198 = vmatpush2.msra.mxu0 0.0
        %1199 = vmatprep.subr.mxu0 0.0
        %1200 = vmatpush2.msra.mxu0 0.0
        %1201 = vmatprep.subr.mxu0 0.0
        %1202 = vmatpush2.msra.mxu0 0.0
        %1203 = vmatprep.subr.mxu0 0.0
        %1204 = vmatpush2.msra.mxu0 0.0
        %1205 = vmatprep.subr.mxu0 0.0
        %1206 = vmatpush2.msra.mxu0 0.0
        %1207 = vmatprep.subr.mxu0 0.0
        %1208 = vmatpush2.msra.mxu0 0.0
        %1209 = vmatprep.mubr.f32.mxu0 0.0
        %1210 = vmatmul.mubr.f32.gmra.mxu0 %v1143
        %v1211 = vpop.f32.mrf.mxu0
        %v1212 = vadd.f32 %v1139, %v1211
        %v1213 = vpop.f32.mrf.mxu0
        %1214 = vdwg.mxu0
        %v1215 = vld [vmem:[#allocation2] sm:$0xff]
        %vm1216 = vcmask 64512
        %v1218 = vsel %vm1216, %v1212, 0
        %v1221 = vsel %vm1216, %v1215, 0
        %1223 = vmatprep.subr.mxu0 0.0
        %1224 = vmatpush1.xpose.msra.mxu0 0.0
        %1225 = vmatprep.subr.mxu0 0.0
        %1226 = vmatpush1.xpose.msra.mxu0 0.0
        %1227 = vmatprep.subr.mxu0 0.0
        %1228 = vmatpush1.xpose.msra.mxu0 0.0
        %1229 = vmatprep.subr.mxu0 0.0
        %1230 = vmatpush1.xpose.msra.mxu0 0.0
        %1231 = vmatprep.subr.mxu0 0.0
        %1232 = vmatpush1.xpose.msra.mxu0 0.0
        %1233 = vmatprep.subr.mxu0 0.0
        %1234 = vmatpush1.xpose.msra.mxu0 0.0
        %1235 = vmatprep.subr.mxu0 0.0
        %1236 = vmatpush1.xpose.msra.mxu0 0.0
        %1237 = vmatprep.subr.mxu0 0.0
        %1238 = vmatpush1.xpose.msra.mxu0 0.0
        %1239 = vmatprep.subr.mxu0 0.0
        %1240 = vmatpush1.xpose.msra.mxu0 0.0
        %1241 = vmatprep.subr.mxu0 0.0
        %1242 = vmatpush1.xpose.msra.mxu0 0.0
        %1243 = vmatprep.subr.mxu0 0.0
        %1244 = vmatpush1.xpose.msra.mxu0 0.0
        %1245 = vmatprep.subr.mxu0 0.0
        %1246 = vmatpush1.xpose.msra.mxu0 0.0
        %1247 = vmatprep.subr.mxu0 0.0
        %1248 = vmatpush1.xpose.msra.mxu0 0.0
        %1249 = vmatprep.subr.mxu0 0.0
        %1250 = vmatpush1.xpose.msra.mxu0 0.0
        %1251 = vmatprep.subr.mxu0 0.0
        %1252 = vmatpush1.xpose.msra.mxu0 0.0
        %1253 = vmatprep.subr.mxu0 0.0
        %1254 = vmatpush1.xpose.msra.mxu0 %v1221
        %1255 = vmatprep.subr.mxu0 0.0
        %1256 = vmatpush2.xpose.msra.mxu0 0.0
        %1257 = vmatprep.subr.mxu0 0.0
        %1258 = vmatpush2.xpose.msra.mxu0 0.0
        %1259 = vmatprep.subr.mxu0 0.0
        %1260 = vmatpush2.xpose.msra.mxu0 0.0
        %1261 = vmatprep.subr.mxu0 0.0
        %1262 = vmatpush2.xpose.msra.mxu0 0.0
        %1263 = vmatprep.subr.mxu0 0.0
        %1264 = vmatpush2.xpose.msra.mxu0 0.0
        %1265 = vmatprep.subr.mxu0 0.0
        %1266 = vmatpush2.xpose.msra.mxu0 0.0
        %1267 = vmatprep.subr.mxu0 0.0
        %1268 = vmatpush2.xpose.msra.mxu0 0.0
        %1269 = vmatprep.subr.mxu0 0.0
        %1270 = vmatpush2.xpose.msra.mxu0 0.0
        %1271 = vmatprep.subr.mxu0 0.0
        %1272 = vmatpush2.xpose.msra.mxu0 0.0
        %1273 = vmatprep.subr.mxu0 0.0
        %1274 = vmatpush2.xpose.msra.mxu0 0.0
        %1275 = vmatprep.subr.mxu0 0.0
        %1276 = vmatpush2.xpose.msra.mxu0 0.0
        %1277 = vmatprep.subr.mxu0 0.0
        %1278 = vmatpush2.xpose.msra.mxu0 0.0
        %1279 = vmatprep.subr.mxu0 0.0
        %1280 = vmatpush2.xpose.msra.mxu0 0.0
        %1281 = vmatprep.subr.mxu0 0.0
        %1282 = vmatpush2.xpose.msra.mxu0 0.0
        %1283 = vmatprep.subr.mxu0 0.0
        %1284 = vmatpush2.xpose.msra.mxu0 0.0
        %1285 = vmatprep.subr.mxu0 0.0
        %1286 = vmatpush2.xpose.msra.mxu0 0.0
        %1287 = vmatprep.mubr.f32.mxu0 0.0
        %1288 = vmatmul.mubr.f32.gmra.mxu0 %v1218
        %v1289 = vpop.f32.mrf.mxu0
        %v1290 = vadd.f32 0.0, %v1289
        %v1291 = vpop.f32.mrf.mxu0
        %1292 = vdwg.mxu0
        %v1293 = vsel %vm1216, %v1290, -inf
        %1294 = vmax.xlane.f32.xlu0 %v1293
        %v1295 = vpop.xlane.xlu0 %1294
        %v1296 = vsub.f32 %v1290, %v1295
        %v1297 = vmul.f32 %v1296, 1.442695
        %v1298 = vpow.pop %v1297
        %v1299 = vsel %vm1216, %v1298, 0.0
        %1300 = vadd.xlane.f32.xlu0 %v1299
        %v1301 = vpop.xlane.xlu0 %1300
        %v1302 = vld [vmem:[#allocation3] sm:$0xff]
        %v1304 = vsel %vm1216, %v1298, 0
        %1306 = vmatprep.subr.mxu0 0.0
        %1307 = vmatpush1.msra.mxu0 0.0
        %1308 = vmatprep.subr.mxu0 0.0
        %1309 = vmatpush1.msra.mxu0 0.0
        %1310 = vmatprep.subr.mxu0 0.0
        %1311 = vmatpush1.msra.mxu0 0.0
        %1312 = vmatprep.subr.mxu0 0.0
        %1313 = vmatpush1.msra.mxu0 0.0
        %1314 = vmatprep.subr.mxu0 0.0
        %1315 = vmatpush1.msra.mxu0 0.0
        %1316 = vmatprep.subr.mxu0 0.0
        %1317 = vmatpush1.msra.mxu0 0.0
        %1318 = vmatprep.subr.mxu0 0.0
        %1319 = vmatpush1.msra.mxu0 0.0
        %1320 = vmatprep.subr.mxu0 0.0
        %1321 = vmatpush1.msra.mxu0 0.0
        %1322 = vmatprep.subr.mxu0 0.0
        %1323 = vmatpush1.msra.mxu0 0.0
        %1324 = vmatprep.subr.mxu0 0.0
        %1325 = vmatpush1.msra.mxu0 0.0
        %1326 = vmatprep.subr.mxu0 0.0
        %1327 = vmatpush1.msra.mxu0 0.0
        %1328 = vmatprep.subr.mxu0 0.0
        %1329 = vmatpush1.msra.mxu0 0.0
        %1330 = vmatprep.subr.mxu0 0.0
        %1331 = vmatpush1.msra.mxu0 0.0
        %1332 = vmatprep.subr.mxu0 0.0
        %1333 = vmatpush1.msra.mxu0 0.0
        %1334 = vmatprep.subr.mxu0 0.0
        %1335 = vmatpush1.msra.mxu0 0.0
        %1336 = vmatprep.subr.mxu0 0.0
        %1337 = vmatpush1.msra.mxu0 %v1302
        %1338 = vmatprep.subr.mxu0 0.0
        %1339 = vmatpush2.msra.mxu0 0.0
        %1340 = vmatprep.subr.mxu0 0.0
        %1341 = vmatpush2.msra.mxu0 0.0
        %1342 = vmatprep.subr.mxu0 0.0
        %1343 = vmatpush2.msra.mxu0 0.0
        %1344 = vmatprep.subr.mxu0 0.0
        %1345 = vmatpush2.msra.mxu0 0.0
        %1346 = vmatprep.subr.mxu0 0.0
        %1347 = vmatpush2.msra.mxu0 0.0
        %1348 = vmatprep.subr.mxu0 0.0
        %1349 = vmatpush2.msra.mxu0 0.0
        %1350 = vmatprep.subr.mxu0 0.0
        %1351 = vmatpush2.msra.mxu0 0.0
        %1352 = vmatprep.subr.mxu0 0.0
        %1353 = vmatpush2.msra.mxu0 0.0
        %1354 = vmatprep.subr.mxu0 0.0
        %1355 = vmatpush2.msra.mxu0 0.0
        %1356 = vmatprep.subr.mxu0 0.0
        %1357 = vmatpush2.msra.mxu0 0.0
        %1358 = vmatprep.subr.mxu0 0.0
        %1359 = vmatpush2.msra.mxu0 0.0
        %1360 = vmatprep.subr.mxu0 0.0
        %1361 = vmatpush2.msra.mxu0 0.0
        %1362 = vmatprep.subr.mxu0 0.0
        %1363 = vmatpush2.msra.mxu0 0.0
        %1364 = vmatprep.subr.mxu0 0.0
        %1365 = vmatpush2.msra.mxu0 0.0
        %1366 = vmatprep.subr.mxu0 0.0
        %1367 = vmatpush2.msra.mxu0 0.0
        %1368 = vmatprep.subr.mxu0 0.0
        %1369 = vmatpush2.msra.mxu0 0.0
        %1370 = vmatprep.mubr.f32.mxu0 0.0
        %1371 = vmatmul.mubr.f32.gmra.mxu0 %v1304
        %v1372 = vpop.f32.mrf.mxu0
        %v1373 = vadd.f32 0.0, %v1372
        %v1374 = vpop.f32.mrf.mxu0
        %1375 = vdwg.mxu0
        %v1376 = vrcp.pop %v1301
        %v1377 = vmul.f32 %v1373, %v1376
        %1378 = vst.msk [vmem:[#allocation4] sm:$0xff] %vm1216, %v1377
        %s1379 = scalar_lea.vmem %s3, 32
        %v1380 = vld [vmem:[%s1379] sm:$0xff]
        %v1381 = vld [vmem:[%s1379 + $0x8] sm:$0xff]
        %v1382 = vld [vmem:[%s1379 + $0x10] sm:$0xff]
        %v1383 = vld [vmem:[%s1379 + $0x18] sm:$0xff]
        %s1384 = scalar_lea.vmem %s4, 1
        %v1385 = vld [vmem:[%s1384] sm:$0x1]
        %v1387 = vlaneseq
        %v1388 = vshrl.u32 %v1387, 7
        %v1389 = vsub.s32 0, %v1388
        %v1390 = vrot.slane %v1385, %v1389
        %1392 = vmatprep.subr.mxu0 0.0
        %1393 = vmatpush1.msra.mxu0 0.0
        %1394 = vmatprep.subr.mxu0 0.0
        %1395 = vmatpush1.msra.mxu0 0.0
        %1396 = vmatprep.subr.mxu0 0.0
        %1397 = vmatpush1.msra.mxu0 0.0
        %1398 = vmatprep.subr.mxu0 0.0
        %1399 = vmatpush1.msra.mxu0 0.0
        %1400 = vmatprep.subr.mxu0 0.0
        %1401 = vmatpush1.msra.mxu0 0.0
        %1402 = vmatprep.subr.mxu0 0.0
        %1403 = vmatpush1.msra.mxu0 0.0
        %1404 = vmatprep.subr.mxu0 0.0
        %1405 = vmatpush1.msra.mxu0 0.0
        %1406 = vmatprep.subr.mxu0 0.0
        %1407 = vmatpush1.msra.mxu0 0.0
        %1408 = vmatprep.subr.mxu0 0.0
        %1409 = vmatpush1.msra.mxu0 0.0
        %1410 = vmatprep.subr.mxu0 0.0
        %1411 = vmatpush1.msra.mxu0 0.0
        %1412 = vmatprep.subr.mxu0 0.0
        %1413 = vmatpush1.msra.mxu0 0.0
        %1414 = vmatprep.subr.mxu0 0.0
        %1415 = vmatpush1.msra.mxu0 0.0
        %1416 = vmatprep.subr.mxu0 0.0
        %1417 = vmatpush1.msra.mxu0 %v1383
        %1418 = vmatprep.subr.mxu0 0.0
        %1419 = vmatpush1.msra.mxu0 %v1382
        %1420 = vmatprep.subr.mxu0 0.0
        %1421 = vmatpush1.msra.mxu0 %v1381
        %1422 = vmatprep.subr.mxu0 0.0
        %1423 = vmatpush1.msra.mxu0 %v1380
        %1424 = vmatprep.subr.mxu0 0.0
        %1425 = vmatpush2.msra.mxu0 0.0
        %1426 = vmatprep.subr.mxu0 0.0
        %1427 = vmatpush2.msra.mxu0 0.0
        %1428 = vmatprep.subr.mxu0 0.0
        %1429 = vmatpush2.msra.mxu0 0.0
        %1430 = vmatprep.subr.mxu0 0.0
        %1431 = vmatpush2.msra.mxu0 0.0
        %1432 = vmatprep.subr.mxu0 0.0
        %1433 = vmatpush2.msra.mxu0 0.0
        %1434 = vmatprep.subr.mxu0 0.0
        %1435 = vmatpush2.msra.mxu0 0.0
        %1436 = vmatprep.subr.mxu0 0.0
        %1437 = vmatpush2.msra.mxu0 0.0
        %1438 = vmatprep.subr.mxu0 0.0
        %1439 = vmatpush2.msra.mxu0 0.0
        %1440 = vmatprep.subr.mxu0 0.0
        %1441 = vmatpush2.msra.mxu0 0.0
        %1442 = vmatprep.subr.mxu0 0.0
        %1443 = vmatpush2.msra.mxu0 0.0
        %1444 = vmatprep.subr.mxu0 0.0
        %1445 = vmatpush2.msra.mxu0 0.0
        %1446 = vmatprep.subr.mxu0 0.0
        %1447 = vmatpush2.msra.mxu0 0.0
        %1448 = vmatprep.subr.mxu0 0.0
        %1449 = vmatpush2.msra.mxu0 0.0
        %1450 = vmatprep.subr.mxu0 0.0
        %1451 = vmatpush2.msra.mxu0 0.0
        %1452 = vmatprep.subr.mxu0 0.0
        %1453 = vmatpush2.msra.mxu0 0.0
        %1454 = vmatprep.subr.mxu0 0.0
        %1455 = vmatpush2.msra.mxu0 0.0
        %1456 = vmatprep.mubr.f32.mxu0 0.0
        %1457 = vmatmul.mubr.f32.gmra.mxu0 %v1143
        %v1458 = vpop.f32.mrf.mxu0
        %v1459 = vadd.f32 %v1390, %v1458
        %v1460 = vpop.f32.mrf.mxu0
        %1461 = vdwg.mxu0
        %s1462 = scalar_lea.vmem [#allocation2], 8
        %v1463 = vld [vmem:[%s1462] sm:$0xff]
        %v1465 = vsel %vm1216, %v1459, 0
        %v1468 = vsel %vm1216, %v1463, 0
        %1470 = vmatprep.subr.mxu0 0.0
        %1471 = vmatpush1.xpose.msra.mxu0 0.0
        %1472 = vmatprep.subr.mxu0 0.0
        %1473 = vmatpush1.xpose.msra.mxu0 0.0
        %1474 = vmatprep.subr.mxu0 0.0
        %1475 = vmatpush1.xpose.msra.mxu0 0.0
        %1476 = vmatprep.subr.mxu0 0.0
        %1477 = vmatpush1.xpose.msra.mxu0 0.0
        %1478 = vmatprep.subr.mxu0 0.0
        %1479 = vmatpush1.xpose.msra.mxu0 0.0
        %1480 = vmatprep.subr.mxu0 0.0
        %1481 = vmatpush1.xpose.msra.mxu0 0.0
        %1482 = vmatprep.subr.mxu0 0.0
        %1483 = vmatpush1.xpose.msra.mxu0 0.0
        %1484 = vmatprep.subr.mxu0 0.0
        %1485 = vmatpush1.xpose.msra.mxu0 0.0
        %1486 = vmatprep.subr.mxu0 0.0
        %1487 = vmatpush1.xpose.msra.mxu0 0.0
        %1488 = vmatprep.subr.mxu0 0.0
        %1489 = vmatpush1.xpose.msra.mxu0 0.0
        %1490 = vmatprep.subr.mxu0 0.0
        %1491 = vmatpush1.xpose.msra.mxu0 0.0
        %1492 = vmatprep.subr.mxu0 0.0
        %1493 = vmatpush1.xpose.msra.mxu0 0.0
        %1494 = vmatprep.subr.mxu0 0.0
        %1495 = vmatpush1.xpose.msra.mxu0 0.0
        %1496 = vmatprep.subr.mxu0 0.0
        %1497 = vmatpush1.xpose.msra.mxu0 0.0
        %1498 = vmatprep.subr.mxu0 0.0
        %1499 = vmatpush1.xpose.msra.mxu0 0.0
        %1500 = vmatprep.subr.mxu0 0.0
        %1501 = vmatpush1.xpose.msra.mxu0 %v1468
        %1502 = vmatprep.subr.mxu0 0.0
        %1503 = vmatpush2.xpose.msra.mxu0 0.0
        %1504 = vmatprep.subr.mxu0 0.0
        %1505 = vmatpush2.xpose.msra.mxu0 0.0
        %1506 = vmatprep.subr.mxu0 0.0
        %1507 = vmatpush2.xpose.msra.mxu0 0.0
        %1508 = vmatprep.subr.mxu0 0.0
        %1509 = vmatpush2.xpose.msra.mxu0 0.0
        %1510 = vmatprep.subr.mxu0 0.0
        %1511 = vmatpush2.xpose.msra.mxu0 0.0
        %1512 = vmatprep.subr.mxu0 0.0
        %1513 = vmatpush2.xpose.msra.mxu0 0.0
        %1514 = vmatprep.subr.mxu0 0.0
        %1515 = vmatpush2.xpose.msra.mxu0 0.0
        %1516 = vmatprep.subr.mxu0 0.0
        %1517 = vmatpush2.xpose.msra.mxu0 0.0
        %1518 = vmatprep.subr.mxu0 0.0
        %1519 = vmatpush2.xpose.msra.mxu0 0.0
        %1520 = vmatprep.subr.mxu0 0.0
        %1521 = vmatpush2.xpose.msra.mxu0 0.0
        %1522 = vmatprep.subr.mxu0 0.0
        %1523 = vmatpush2.xpose.msra.mxu0 0.0
        %1524 = vmatprep.subr.mxu0 0.0
        %1525 = vmatpush2.xpose.msra.mxu0 0.0
        %1526 = vmatprep.subr.mxu0 0.0
        %1527 = vmatpush2.xpose.msra.mxu0 0.0
        %1528 = vmatprep.subr.mxu0 0.0
        %1529 = vmatpush2.xpose.msra.mxu0 0.0
        %1530 = vmatprep.subr.mxu0 0.0
        %1531 = vmatpush2.xpose.msra.mxu0 0.0
        %1532 = vmatprep.subr.mxu0 0.0
        %1533 = vmatpush2.xpose.msra.mxu0 0.0
        %1534 = vmatprep.mubr.f32.mxu0 0.0
        %1535 = vmatmul.mubr.f32.gmra.mxu0 %v1465
        %v1536 = vpop.f32.mrf.mxu0
        %v1537 = vadd.f32 0.0, %v1536
        %v1538 = vpop.f32.mrf.mxu0
        %1539 = vdwg.mxu0
        %v1540 = vsel %vm1216, %v1537, -inf
        %1541 = vmax.xlane.f32.xlu0 %v1540
        %v1542 = vpop.xlane.xlu0 %1541
        %v1543 = vsub.f32 %v1537, %v1542
        %v1544 = vmul.f32 %v1543, 1.442695
        %v1545 = vpow.pop %v1544
        %v1546 = vsel %vm1216, %v1545, 0.0
        %1547 = vadd.xlane.f32.xlu0 %v1546
        %v1548 = vpop.xlane.xlu0 %1547
        %s1549 = scalar_lea.vmem [#allocation3], 8
        %v1550 = vld [vmem:[%s1549] sm:$0xff]
        %v1552 = vsel %vm1216, %v1545, 0
        %1554 = vmatprep.subr.mxu0 0.0
        %1555 = vmatpush1.msra.mxu0 0.0
        %1556 = vmatprep.subr.mxu0 0.0
        %1557 = vmatpush1.msra.mxu0 0.0
        %1558 = vmatprep.subr.mxu0 0.0
        %1559 = vmatpush1.msra.mxu0 0.0
        %1560 = vmatprep.subr.mxu0 0.0
        %1561 = vmatpush1.msra.mxu0 0.0
        %1562 = vmatprep.subr.mxu0 0.0
        %1563 = vmatpush1.msra.mxu0 0.0
        %1564 = vmatprep.subr.mxu0 0.0
        %1565 = vmatpush1.msra.mxu0 0.0
        %1566 = vmatprep.subr.mxu0 0.0
        %1567 = vmatpush1.msra.mxu0 0.0
        %1568 = vmatprep.subr.mxu0 0.0
        %1569 = vmatpush1.msra.mxu0 0.0
        %1570 = vmatprep.subr.mxu0 0.0
        %1571 = vmatpush1.msra.mxu0 0.0
        %1572 = vmatprep.subr.mxu0 0.0
        %1573 = vmatpush1.msra.mxu0 0.0
        %1574 = vmatprep.subr.mxu0 0.0
        %1575 = vmatpush1.msra.mxu0 0.0
        %1576 = vmatprep.subr.mxu0 0.0
        %1577 = vmatpush1.msra.mxu0 0.0
        %1578 = vmatprep.subr.mxu0 0.0
        %1579 = vmatpush1.msra.mxu0 0.0
        %1580 = vmatprep.subr.mxu0 0.0
        %1581 = vmatpush1.msra.mxu0 0.0
        %1582 = vmatprep.subr.mxu0 0.0
        %1583 = vmatpush1.msra.mxu0 0.0
        %1584 = vmatprep.subr.mxu0 0.0
        %1585 = vmatpush1.msra.mxu0 %v1550
        %1586 = vmatprep.subr.mxu0 0.0
        %1587 = vmatpush2.msra.mxu0 0.0
        %1588 = vmatprep.subr.mxu0 0.0
        %1589 = vmatpush2.msra.mxu0 0.0
        %1590 = vmatprep.subr.mxu0 0.0
        %1591 = vmatpush2.msra.mxu0 0.0
        %1592 = vmatprep.subr.mxu0 0.0
        %1593 = vmatpush2.msra.mxu0 0.0
        %1594 = vmatprep.subr.mxu0 0.0
        %1595 = vmatpush2.msra.mxu0 0.0
        %1596 = vmatprep.subr.mxu0 0.0
        %1597 = vmatpush2.msra.mxu0 0.0
        %1598 = vmatprep.subr.mxu0 0.0
        %1599 = vmatpush2.msra.mxu0 0.0
        %1600 = vmatprep.subr.mxu0 0.0
        %1601 = vmatpush2.msra.mxu0 0.0
        %1602 = vmatprep.subr.mxu0 0.0
        %1603 = vmatpush2.msra.mxu0 0.0
        %1604 = vmatprep.subr.mxu0 0.0
        %1605 = vmatpush2.msra.mxu0 0.0
        %1606 = vmatprep.subr.mxu0 0.0
        %1607 = vmatpush2.msra.mxu0 0.0
        %1608 = vmatprep.subr.mxu0 0.0
        %1609 = vmatpush2.msra.mxu0 0.0
        %1610 = vmatprep.subr.mxu0 0.0
        %1611 = vmatpush2.msra.mxu0 0.0
        %1612 = vmatprep.subr.mxu0 0.0
        %1613 = vmatpush2.msra.mxu0 0.0
        %1614 = vmatprep.subr.mxu0 0.0
        %1615 = vmatpush2.msra.mxu0 0.0
        %1616 = vmatprep.subr.mxu0 0.0
        %1617 = vmatpush2.msra.mxu0 0.0
        %1618 = vmatprep.mubr.f32.mxu0 0.0
        %1619 = vmatmul.mubr.f32.gmra.mxu0 %v1552
        %v1620 = vpop.f32.mrf.mxu0
        %v1621 = vadd.f32 0.0, %v1620
        %v1622 = vpop.f32.mrf.mxu0
        %1623 = vdwg.mxu0
        %v1624 = vrcp.pop %v1548
        %v1625 = vmul.f32 %v1621, %v1624
        %1627 = vrot.lane.b32.xlu0 %v1625, 8
        %v1628 = vpop.permute.xlu0 %1627
        %vm1630 = vcmask 130112
        %1631 = vst.msk [vmem:[#allocation4] sm:$0xff] %vm1630, %v1628
        %s1632 = scalar_lea.vmem %s3, 64
        %v1633 = vld [vmem:[%s1632] sm:$0xff]
        %v1634 = vld [vmem:[%s1632 + $0x8] sm:$0xff]
        %v1635 = vld [vmem:[%s1632 + $0x10] sm:$0xff]
        %v1636 = vld [vmem:[%s1632 + $0x18] sm:$0xff]
        %s1637 = scalar_lea.vmem %s4, 2
        %v1638 = vld [vmem:[%s1637] sm:$0x1]
        %v1640 = vlaneseq
        %v1641 = vshrl.u32 %v1640, 7
        %v1642 = vsub.s32 0, %v1641
        %v1643 = vrot.slane %v1638, %v1642
        %1645 = vmatprep.subr.mxu0 0.0
        %1646 = vmatpush1.msra.mxu0 0.0
        %1647 = vmatprep.subr.mxu0 0.0
        %1648 = vmatpush1.msra.mxu0 0.0
        %1649 = vmatprep.subr.mxu0 0.0
        %1650 = vmatpush1.msra.mxu0 0.0
        %1651 = vmatprep.subr.mxu0 0.0
        %1652 = vmatpush1.msra.mxu0 0.0
        %1653 = vmatprep.subr.mxu0 0.0
        %1654 = vmatpush1.msra.mxu0 0.0
        %1655 = vmatprep.subr.mxu0 0.0
        %1656 = vmatpush1.msra.mxu0 0.0
        %1657 = vmatprep.subr.mxu0 0.0
        %1658 = vmatpush1.msra.mxu0 0.0
        %1659 = vmatprep.subr.mxu0 0.0
        %1660 = vmatpush1.msra.mxu0 0.0
        %1661 = vmatprep.subr.mxu0 0.0
        %1662 = vmatpush1.msra.mxu0 0.0
        %1663 = vmatprep.subr.mxu0 0.0
        %1664 = vmatpush1.msra.mxu0 0.0
        %1665 = vmatprep.subr.mxu0 0.0
        %1666 = vmatpush1.msra.mxu0 0.0
        %1667 = vmatprep.subr.mxu0 0.0
        %1668 = vmatpush1.msra.mxu0 0.0
        %1669 = vmatprep.subr.mxu0 0.0
        %1670 = vmatpush1.msra.mxu0 %v1636
        %1671 = vmatprep.subr.mxu0 0.0
        %1672 = vmatpush1.msra.mxu0 %v1635
        %1673 = vmatprep.subr.mxu0 0.0
        %1674 = vmatpush1.msra.mxu0 %v1634
        %1675 = vmatprep.subr.mxu0 0.0
        %1676 = vmatpush1.msra.mxu0 %v1633
        %1677 = vmatprep.subr.mxu0 0.0
        %1678 = vmatpush2.msra.mxu0 0.0
        %1679 = vmatprep.subr.mxu0 0.0
        %1680 = vmatpush2.msra.mxu0 0.0
        %1681 = vmatprep.subr.mxu0 0.0
        %1682 = vmatpush2.msra.mxu0 0.0
        %1683 = vmatprep.subr.mxu0 0.0
        %1684 = vmatpush2.msra.mxu0 0.0
        %1685 = vmatprep.subr.mxu0 0.0
        %1686 = vmatpush2.msra.mxu0 0.0
        %1687 = vmatprep.subr.mxu0 0.0
        %1688 = vmatpush2.msra.mxu0 0.0
        %1689 = vmatprep.subr.mxu0 0.0
        %1690 = vmatpush2.msra.mxu0 0.0
        %1691 = vmatprep.subr.mxu0 0.0
        %1692 = vmatpush2.msra.mxu0 0.0
        %1693 = vmatprep.subr.mxu0 0.0
        %1694 = vmatpush2.msra.mxu0 0.0
        %1695 = vmatprep.subr.mxu0 0.0
        %1696 = vmatpush2.msra.mxu0 0.0
        %1697 = vmatprep.subr.mxu0 0.0
        %1698 = vmatpush2.msra.mxu0 0.0
        %1699 = vmatprep.subr.mxu0 0.0
        %1700 = vmatpush2.msra.mxu0 0.0
        %1701 = vmatprep.subr.mxu0 0.0
        %1702 = vmatpush2.msra.mxu0 0.0
        %1703 = vmatprep.subr.mxu0 0.0
        %1704 = vmatpush2.msra.mxu0 0.0
        %1705 = vmatprep.subr.mxu0 0.0
        %1706 = vmatpush2.msra.mxu0 0.0
        %1707 = vmatprep.subr.mxu0 0.0
        %1708 = vmatpush2.msra.mxu0 0.0
        %1709 = vmatprep.mubr.f32.mxu0 0.0
        %1710 = vmatmul.mubr.f32.gmra.mxu0 %v1143
        %v1711 = vpop.f32.mrf.mxu0
        %v1712 = vadd.f32 %v1643, %v1711
        %v1713 = vpop.f32.mrf.mxu0
        %1714 = vdwg.mxu0
        %s1715 = scalar_lea.vmem [#allocation2], 16
        %v1716 = vld [vmem:[%s1715] sm:$0xff]
        %v1718 = vsel %vm1216, %v1712, 0
        %v1721 = vsel %vm1216, %v1716, 0
        %1723 = vmatprep.subr.mxu0 0.0
        %1724 = vmatpush1.xpose.msra.mxu0 0.0
        %1725 = vmatprep.subr.mxu0 0.0
        %1726 = vmatpush1.xpose.msra.mxu0 0.0
        %1727 = vmatprep.subr.mxu0 0.0
        %1728 = vmatpush1.xpose.msra.mxu0 0.0
        %1729 = vmatprep.subr.mxu0 0.0
        %1730 = vmatpush1.xpose.msra.mxu0 0.0
        %1731 = vmatprep.subr.mxu0 0.0
        %1732 = vmatpush1.xpose.msra.mxu0 0.0
        %1733 = vmatprep.subr.mxu0 0.0
        %1734 = vmatpush1.xpose.msra.mxu0 0.0
        %1735 = vmatprep.subr.mxu0 0.0
        %1736 = vmatpush1.xpose.msra.mxu0 0.0
        %1737 = vmatprep.subr.mxu0 0.0
        %1738 = vmatpush1.xpose.msra.mxu0 0.0
        %1739 = vmatprep.subr.mxu0 0.0
        %1740 = vmatpush1.xpose.msra.mxu0 0.0
        %1741 = vmatprep.subr.mxu0 0.0
        %1742 = vmatpush1.xpose.msra.mxu0 0.0
        %1743 = vmatprep.subr.mxu0 0.0
        %1744 = vmatpush1.xpose.msra.mxu0 0.0
        %1745 = vmatprep.subr.mxu0 0.0
        %1746 = vmatpush1.xpose.msra.mxu0 0.0
        %1747 = vmatprep.subr.mxu0 0.0
        %1748 = vmatpush1.xpose.msra.mxu0 0.0
        %1749 = vmatprep.subr.mxu0 0.0
        %1750 = vmatpush1.xpose.msra.mxu0 0.0
        %1751 = vmatprep.subr.mxu0 0.0
        %1752 = vmatpush1.xpose.msra.mxu0 0.0
        %1753 = vmatprep.subr.mxu0 0.0
        %1754 = vmatpush1.xpose.msra.mxu0 %v1721
        %1755 = vmatprep.subr.mxu0 0.0
        %1756 = vmatpush2.xpose.msra.mxu0 0.0
        %1757 = vmatprep.subr.mxu0 0.0
        %1758 = vmatpush2.xpose.msra.mxu0 0.0
        %1759 = vmatprep.subr.mxu0 0.0
        %1760 = vmatpush2.xpose.msra.mxu0 0.0
        %1761 = vmatprep.subr.mxu0 0.0
        %1762 = vmatpush2.xpose.msra.mxu0 0.0
        %1763 = vmatprep.subr.mxu0 0.0
        %1764 = vmatpush2.xpose.msra.mxu0 0.0
        %1765 = vmatprep.subr.mxu0 0.0
        %1766 = vmatpush2.xpose.msra.mxu0 0.0
        %1767 = vmatprep.subr.mxu0 0.0
        %1768 = vmatpush2.xpose.msra.mxu0 0.0
        %1769 = vmatprep.subr.mxu0 0.0
        %1770 = vmatpush2.xpose.msra.mxu0 0.0
        %1771 = vmatprep.subr.mxu0 0.0
        %1772 = vmatpush2.xpose.msra.mxu0 0.0
        %1773 = vmatprep.subr.mxu0 0.0
        %1774 = vmatpush2.xpose.msra.mxu0 0.0
        %1775 = vmatprep.subr.mxu0 0.0
        %1776 = vmatpush2.xpose.msra.mxu0 0.0
        %1777 = vmatprep.subr.mxu0 0.0
        %1778 = vmatpush2.xpose.msra.mxu0 0.0
        %1779 = vmatprep.subr.mxu0 0.0
        %1780 = vmatpush2.xpose.msra.mxu0 0.0
        %1781 = vmatprep.subr.mxu0 0.0
        %1782 = vmatpush2.xpose.msra.mxu0 0.0
        %1783 = vmatprep.subr.mxu0 0.0
        %1784 = vmatpush2.xpose.msra.mxu0 0.0
        %1785 = vmatprep.subr.mxu0 0.0
        %1786 = vmatpush2.xpose.msra.mxu0 0.0
        %1787 = vmatprep.mubr.f32.mxu0 0.0
        %1788 = vmatmul.mubr.f32.gmra.mxu0 %v1718
        %v1789 = vpop.f32.mrf.mxu0
        %v1790 = vadd.f32 0.0, %v1789
        %v1791 = vpop.f32.mrf.mxu0
        %1792 = vdwg.mxu0
        %v1793 = vsel %vm1216, %v1790, -inf
        %1794 = vmax.xlane.f32.xlu0 %v1793
        %v1795 = vpop.xlane.xlu0 %1794
        %v1796 = vsub.f32 %v1790, %v1795
        %v1797 = vmul.f32 %v1796, 1.442695
        %v1798 = vpow.pop %v1797
        %v1799 = vsel %vm1216, %v1798, 0.0
        %1800 = vadd.xlane.f32.xlu0 %v1799
        %v1801 = vpop.xlane.xlu0 %1800
        %s1802 = scalar_lea.vmem [#allocation3], 16
        %v1803 = vld [vmem:[%s1802] sm:$0xff]
        %v1805 = vsel %vm1216, %v1798, 0
        %1807 = vmatprep.subr.mxu0 0.0
        %1808 = vmatpush1.msra.mxu0 0.0
        %1809 = vmatprep.subr.mxu0 0.0
        %1810 = vmatpush1.msra.mxu0 0.0
        %1811 = vmatprep.subr.mxu0 0.0
        %1812 = vmatpush1.msra.mxu0 0.0
        %1813 = vmatprep.subr.mxu0 0.0
        %1814 = vmatpush1.msra.mxu0 0.0
        %1815 = vmatprep.subr.mxu0 0.0
        %1816 = vmatpush1.msra.mxu0 0.0
        %1817 = vmatprep.subr.mxu0 0.0
        %1818 = vmatpush1.msra.mxu0 0.0
        %1819 = vmatprep.subr.mxu0 0.0
        %1820 = vmatpush1.msra.mxu0 0.0
        %1821 = vmatprep.subr.mxu0 0.0
        %1822 = vmatpush1.msra.mxu0 0.0
        %1823 = vmatprep.subr.mxu0 0.0
        %1824 = vmatpush1.msra.mxu0 0.0
        %1825 = vmatprep.subr.mxu0 0.0
        %1826 = vmatpush1.msra.mxu0 0.0
        %1827 = vmatprep.subr.mxu0 0.0
        %1828 = vmatpush1.msra.mxu0 0.0
        %1829 = vmatprep.subr.mxu0 0.0
        %1830 = vmatpush1.msra.mxu0 0.0
        %1831 = vmatprep.subr.mxu0 0.0
        %1832 = vmatpush1.msra.mxu0 0.0
        %1833 = vmatprep.subr.mxu0 0.0
        %1834 = vmatpush1.msra.mxu0 0.0
        %1835 = vmatprep.subr.mxu0 0.0
        %1836 = vmatpush1.msra.mxu0 0.0
        %1837 = vmatprep.subr.mxu0 0.0
        %1838 = vmatpush1.msra.mxu0 %v1803
        %1839 = vmatprep.subr.mxu0 0.0
        %1840 = vmatpush2.msra.mxu0 0.0
        %1841 = vmatprep.subr.mxu0 0.0
        %1842 = vmatpush2.msra.mxu0 0.0
        %1843 = vmatprep.subr.mxu0 0.0
        %1844 = vmatpush2.msra.mxu0 0.0
        %1845 = vmatprep.subr.mxu0 0.0
        %1846 = vmatpush2.msra.mxu0 0.0
        %1847 = vmatprep.subr.mxu0 0.0
        %1848 = vmatpush2.msra.mxu0 0.0
        %1849 = vmatprep.subr.mxu0 0.0
        %1850 = vmatpush2.msra.mxu0 0.0
        %1851 = vmatprep.subr.mxu0 0.0
        %1852 = vmatpush2.msra.mxu0 0.0
        %1853 = vmatprep.subr.mxu0 0.0
        %1854 = vmatpush2.msra.mxu0 0.0
        %1855 = vmatprep.subr.mxu0 0.0
        %1856 = vmatpush2.msra.mxu0 0.0
        %1857 = vmatprep.subr.mxu0 0.0
        %1858 = vmatpush2.msra.mxu0 0.0
        %1859 = vmatprep.subr.mxu0 0.0
        %1860 = vmatpush2.msra.mxu0 0.0
        %1861 = vmatprep.subr.mxu0 0.0
        %1862 = vmatpush2.msra.mxu0 0.0
        %1863 = vmatprep.subr.mxu0 0.0
        %1864 = vmatpush2.msra.mxu0 0.0
        %1865 = vmatprep.subr.mxu0 0.0
        %1866 = vmatpush2.msra.mxu0 0.0
        %1867 = vmatprep.subr.mxu0 0.0
        %1868 = vmatpush2.msra.mxu0 0.0
        %1869 = vmatprep.subr.mxu0 0.0
        %1870 = vmatpush2.msra.mxu0 0.0
        %1871 = vmatprep.mubr.f32.mxu0 0.0
        %1872 = vmatmul.mubr.f32.gmra.mxu0 %v1805
        %v1873 = vpop.f32.mrf.mxu0
        %v1874 = vadd.f32 0.0, %v1873
        %v1875 = vpop.f32.mrf.mxu0
        %1876 = vdwg.mxu0
        %v1877 = vrcp.pop %v1801
        %v1878 = vmul.f32 %v1874, %v1877
        %1880 = vrot.lane.b32.xlu0 %v1878, 16
        %v1881 = vpop.permute.xlu0 %1880
        %vm1883 = vcmask 195712
        %1884 = vst.msk [vmem:[#allocation4] sm:$0xff] %vm1883, %v1881
        %s1885 = scalar_lea.vmem %s3, 96
        %v1886 = vld [vmem:[%s1885] sm:$0xff]
        %v1887 = vld [vmem:[%s1885 + $0x8] sm:$0xff]
        %v1888 = vld [vmem:[%s1885 + $0x10] sm:$0xff]
        %v1889 = vld [vmem:[%s1885 + $0x18] sm:$0xff]
        %s1890 = scalar_lea.vmem %s4, 3
        %v1891 = vld [vmem:[%s1890] sm:$0x1]
        %v1893 = vlaneseq
        %v1894 = vshrl.u32 %v1893, 7
        %v1895 = vsub.s32 0, %v1894
        %v1896 = vrot.slane %v1891, %v1895
        %1898 = vmatprep.subr.mxu0 0.0
        %1899 = vmatpush1.msra.mxu0 0.0
        %1900 = vmatprep.subr.mxu0 0.0
        %1901 = vmatpush1.msra.mxu0 0.0
        %1902 = vmatprep.subr.mxu0 0.0
        %1903 = vmatpush1.msra.mxu0 0.0
        %1904 = vmatprep.subr.mxu0 0.0
        %1905 = vmatpush1.msra.mxu0 0.0
        %1906 = vmatprep.subr.mxu0 0.0
        %1907 = vmatpush1.msra.mxu0 0.0
        %1908 = vmatprep.subr.mxu0 0.0
        %1909 = vmatpush1.msra.mxu0 0.0
        %1910 = vmatprep.subr.mxu0 0.0
        %1911 = vmatpush1.msra.mxu0 0.0
        %1912 = vmatprep.subr.mxu0 0.0
        %1913 = vmatpush1.msra.mxu0 0.0
        %1914 = vmatprep.subr.mxu0 0.0
        %1915 = vmatpush1.msra.mxu0 0.0
        %1916 = vmatprep.subr.mxu0 0.0
        %1917 = vmatpush1.msra.mxu0 0.0
        %1918 = vmatprep.subr.mxu0 0.0
        %1919 = vmatpush1.msra.mxu0 0.0
        %1920 = vmatprep.subr.mxu0 0.0
        %1921 = vmatpush1.msra.mxu0 0.0
        %1922 = vmatprep.subr.mxu0 0.0
        %1923 = vmatpush1.msra.mxu0 %v1889
        %1924 = vmatprep.subr.mxu0 0.0
        %1925 = vmatpush1.msra.mxu0 %v1888
        %1926 = vmatprep.subr.mxu0 0.0
        %1927 = vmatpush1.msra.mxu0 %v1887
        %1928 = vmatprep.subr.mxu0 0.0
        %1929 = vmatpush1.msra.mxu0 %v1886
        %1930 = vmatprep.subr.mxu0 0.0
        %1931 = vmatpush2.msra.mxu0 0.0
        %1932 = vmatprep.subr.mxu0 0.0
        %1933 = vmatpush2.msra.mxu0 0.0
        %1934 = vmatprep.subr.mxu0 0.0
        %1935 = vmatpush2.msra.mxu0 0.0
        %1936 = vmatprep.subr.mxu0 0.0
        %1937 = vmatpush2.msra.mxu0 0.0
        %1938 = vmatprep.subr.mxu0 0.0
        %1939 = vmatpush2.msra.mxu0 0.0
        %1940 = vmatprep.subr.mxu0 0.0
        %1941 = vmatpush2.msra.mxu0 0.0
        %1942 = vmatprep.subr.mxu0 0.0
        %1943 = vmatpush2.msra.mxu0 0.0
        %1944 = vmatprep.subr.mxu0 0.0
        %1945 = vmatpush2.msra.mxu0 0.0
        %1946 = vmatprep.subr.mxu0 0.0
        %1947 = vmatpush2.msra.mxu0 0.0
        %1948 = vmatprep.subr.mxu0 0.0
        %1949 = vmatpush2.msra.mxu0 0.0
        %1950 = vmatprep.subr.mxu0 0.0
        %1951 = vmatpush2.msra.mxu0 0.0
        %1952 = vmatprep.subr.mxu0 0.0
        %1953 = vmatpush2.msra.mxu0 0.0
        %1954 = vmatprep.subr.mxu0 0.0
        %1955 = vmatpush2.msra.mxu0 0.0
        %1956 = vmatprep.subr.mxu0 0.0
        %1957 = vmatpush2.msra.mxu0 0.0
        %1958 = vmatprep.subr.mxu0 0.0
        %1959 = vmatpush2.msra.mxu0 0.0
        %1960 = vmatprep.subr.mxu0 0.0
        %1961 = vmatpush2.msra.mxu0 0.0
        %1962 = vmatprep.mubr.f32.mxu0 0.0
        %1963 = vmatmul.mubr.f32.gmra.mxu0 %v1143
        %v1964 = vpop.f32.mrf.mxu0
        %v1965 = vadd.f32 %v1896, %v1964
        %v1966 = vpop.f32.mrf.mxu0
        %1967 = vdwg.mxu0
        %s1968 = scalar_lea.vmem [#allocation2], 24
        %v1969 = vld [vmem:[%s1968] sm:$0xff]
        %v1971 = vsel %vm1216, %v1965, 0
        %v1974 = vsel %vm1216, %v1969, 0
        %1976 = vmatprep.subr.mxu0 0.0
        %1977 = vmatpush1.xpose.msra.mxu0 0.0
        %1978 = vmatprep.subr.mxu0 0.0
        %1979 = vmatpush1.xpose.msra.mxu0 0.0
        %1980 = vmatprep.subr.mxu0 0.0
        %1981 = vmatpush1.xpose.msra.mxu0 0.0
        %1982 = vmatprep.subr.mxu0 0.0
        %1983 = vmatpush1.xpose.msra.mxu0 0.0
        %1984 = vmatprep.subr.mxu0 0.0
        %1985 = vmatpush1.xpose.msra.mxu0 0.0
        %1986 = vmatprep.subr.mxu0 0.0
        %1987 = vmatpush1.xpose.msra.mxu0 0.0
        %1988 = vmatprep.subr.mxu0 0.0
        %1989 = vmatpush1.xpose.msra.mxu0 0.0
        %1990 = vmatprep.subr.mxu0 0.0
        %1991 = vmatpush1.xpose.msra.mxu0 0.0
        %1992 = vmatprep.subr.mxu0 0.0
        %1993 = vmatpush1.xpose.msra.mxu0 0.0
        %1994 = vmatprep.subr.mxu0 0.0
        %1995 = vmatpush1.xpose.msra.mxu0 0.0
        %1996 = vmatprep.subr.mxu0 0.0
        %1997 = vmatpush1.xpose.msra.mxu0 0.0
        %1998 = vmatprep.subr.mxu0 0.0
        %1999 = vmatpush1.xpose.msra.mxu0 0.0
        %2000 = vmatprep.subr.mxu0 0.0
        %2001 = vmatpush1.xpose.msra.mxu0 0.0
        %2002 = vmatprep.subr.mxu0 0.0
        %2003 = vmatpush1.xpose.msra.mxu0 0.0
        %2004 = vmatprep.subr.mxu0 0.0
        %2005 = vmatpush1.xpose.msra.mxu0 0.0
        %2006 = vmatprep.subr.mxu0 0.0
        %2007 = vmatpush1.xpose.msra.mxu0 %v1974
        %2008 = vmatprep.subr.mxu0 0.0
        %2009 = vmatpush2.xpose.msra.mxu0 0.0
        %2010 = vmatprep.subr.mxu0 0.0
        %2011 = vmatpush2.xpose.msra.mxu0 0.0
        %2012 = vmatprep.subr.mxu0 0.0
        %2013 = vmatpush2.xpose.msra.mxu0 0.0
        %2014 = vmatprep.subr.mxu0 0.0
        %2015 = vmatpush2.xpose.msra.mxu0 0.0
        %2016 = vmatprep.subr.mxu0 0.0
        %2017 = vmatpush2.xpose.msra.mxu0 0.0
        %2018 = vmatprep.subr.mxu0 0.0
        %2019 = vmatpush2.xpose.msra.mxu0 0.0
        %2020 = vmatprep.subr.mxu0 0.0
        %2021 = vmatpush2.xpose.msra.mxu0 0.0
        %2022 = vmatprep.subr.mxu0 0.0
        %2023 = vmatpush2.xpose.msra.mxu0 0.0
        %2024 = vmatprep.subr.mxu0 0.0
        %2025 = vmatpush2.xpose.msra.mxu0 0.0
        %2026 = vmatprep.subr.mxu0 0.0
        %2027 = vmatpush2.xpose.msra.mxu0 0.0
        %2028 = vmatprep.subr.mxu0 0.0
        %2029 = vmatpush2.xpose.msra.mxu0 0.0
        %2030 = vmatprep.subr.mxu0 0.0
        %2031 = vmatpush2.xpose.msra.mxu0 0.0
        %2032 = vmatprep.subr.mxu0 0.0
        %2033 = vmatpush2.xpose.msra.mxu0 0.0
        %2034 = vmatprep.subr.mxu0 0.0
        %2035 = vmatpush2.xpose.msra.mxu0 0.0
        %2036 = vmatprep.subr.mxu0 0.0
        %2037 = vmatpush2.xpose.msra.mxu0 0.0
        %2038 = vmatprep.subr.mxu0 0.0
        %2039 = vmatpush2.xpose.msra.mxu0 0.0
        %2040 = vmatprep.mubr.f32.mxu0 0.0
        %2041 = vmatmul.mubr.f32.gmra.mxu0 %v1971
        %v2042 = vpop.f32.mrf.mxu0
        %v2043 = vadd.f32 0.0, %v2042
        %v2044 = vpop.f32.mrf.mxu0
        %2045 = vdwg.mxu0
        %v2046 = vsel %vm1216, %v2043, -inf
        %2047 = vmax.xlane.f32.xlu0 %v2046
        %v2048 = vpop.xlane.xlu0 %2047
        %v2049 = vsub.f32 %v2043, %v2048
        %v2050 = vmul.f32 %v2049, 1.442695
        %v2051 = vpow.pop %v2050
        %v2052 = vsel %vm1216, %v2051, 0.0
        %2053 = vadd.xlane.f32.xlu0 %v2052
        %v2054 = vpop.xlane.xlu0 %2053
        %s2055 = scalar_lea.vmem [#allocation3], 24
        %v2056 = vld [vmem:[%s2055] sm:$0xff]
        %v2058 = vsel %vm1216, %v2051, 0
        %2060 = vmatprep.subr.mxu0 0.0
        %2061 = vmatpush1.msra.mxu0 0.0
        %2062 = vmatprep.subr.mxu0 0.0
        %2063 = vmatpush1.msra.mxu0 0.0
        %2064 = vmatprep.subr.mxu0 0.0
        %2065 = vmatpush1.msra.mxu0 0.0
        %2066 = vmatprep.subr.mxu0 0.0
        %2067 = vmatpush1.msra.mxu0 0.0
        %2068 = vmatprep.subr.mxu0 0.0
        %2069 = vmatpush1.msra.mxu0 0.0
        %2070 = vmatprep.subr.mxu0 0.0
        %2071 = vmatpush1.msra.mxu0 0.0
        %2072 = vmatprep.subr.mxu0 0.0
        %2073 = vmatpush1.msra.mxu0 0.0
        %2074 = vmatprep.subr.mxu0 0.0
        %2075 = vmatpush1.msra.mxu0 0.0
        %2076 = vmatprep.subr.mxu0 0.0
        %2077 = vmatpush1.msra.mxu0 0.0
        %2078 = vmatprep.subr.mxu0 0.0
        %2079 = vmatpush1.msra.mxu0 0.0
        %2080 = vmatprep.subr.mxu0 0.0
        %2081 = vmatpush1.msra.mxu0 0.0
        %2082 = vmatprep.subr.mxu0 0.0
        %2083 = vmatpush1.msra.mxu0 0.0
        %2084 = vmatprep.subr.mxu0 0.0
        %2085 = vmatpush1.msra.mxu0 0.0
        %2086 = vmatprep.subr.mxu0 0.0
        %2087 = vmatpush1.msra.mxu0 0.0
        %2088 = vmatprep.subr.mxu0 0.0
        %2089 = vmatpush1.msra.mxu0 0.0
        %2090 = vmatprep.subr.mxu0 0.0
        %2091 = vmatpush1.msra.mxu0 %v2056
        %2092 = vmatprep.subr.mxu0 0.0
        %2093 = vmatpush2.msra.mxu0 0.0
        %2094 = vmatprep.subr.mxu0 0.0
        %2095 = vmatpush2.msra.mxu0 0.0
        %2096 = vmatprep.subr.mxu0 0.0
        %2097 = vmatpush2.msra.mxu0 0.0
        %2098 = vmatprep.subr.mxu0 0.0
        %2099 = vmatpush2.msra.mxu0 0.0
        %2100 = vmatprep.subr.mxu0 0.0
        %2101 = vmatpush2.msra.mxu0 0.0
        %2102 = vmatprep.subr.mxu0 0.0
        %2103 = vmatpush2.msra.mxu0 0.0
        %2104 = vmatprep.subr.mxu0 0.0
        %2105 = vmatpush2.msra.mxu0 0.0
        %2106 = vmatprep.subr.mxu0 0.0
        %2107 = vmatpush2.msra.mxu0 0.0
        %2108 = vmatprep.subr.mxu0 0.0
        %2109 = vmatpush2.msra.mxu0 0.0
        %2110 = vmatprep.subr.mxu0 0.0
        %2111 = vmatpush2.msra.mxu0 0.0
        %2112 = vmatprep.subr.mxu0 0.0
        %2113 = vmatpush2.msra.mxu0 0.0
        %2114 = vmatprep.subr.mxu0 0.0
        %2115 = vmatpush2.msra.mxu0 0.0
        %2116 = vmatprep.subr.mxu0 0.0
        %2117 = vmatpush2.msra.mxu0 0.0
        %2118 = vmatprep.subr.mxu0 0.0
        %2119 = vmatpush2.msra.mxu0 0.0
        %2120 = vmatprep.subr.mxu0 0.0
        %2121 = vmatpush2.msra.mxu0 0.0
        %2122 = vmatprep.subr.mxu0 0.0
        %2123 = vmatpush2.msra.mxu0 0.0
        %2124 = vmatprep.mubr.f32.mxu0 0.0
        %2125 = vmatmul.mubr.f32.gmra.mxu0 %v2058
        %v2126 = vpop.f32.mrf.mxu0
        %v2127 = vadd.f32 0.0, %v2126
        %v2128 = vpop.f32.mrf.mxu0
        %2129 = vdwg.mxu0
        %v2130 = vrcp.pop %v2054
        %v2131 = vmul.f32 %v2127, %v2130
        %2133 = vrot.lane.b32.xlu0 %v2131, 24
        %v2134 = vpop.permute.xlu0 %2133
        %vm2136 = vcmask 261312
        %2137 = vst.msk [vmem:[#allocation4] sm:$0xff] %vm2136, %v2134
        %v2138 = vld [vmem:[#allocation4] sm:$0xff]
        %v2139 = vld [vmem:[%s9] sm:$0xff]
        %v2140 = vld [vmem:[%s9 + $0x8] sm:$0xff]
        %v2141 = vld [vmem:[%s9 + $0x10] sm:$0xff]
        %v2142 = vld [vmem:[%s9 + $0x18] sm:$0xff]
        %v2143 = vld [vmem:[%s10] sm:$0x1]
        %v2145 = vlaneseq
        %v2146 = vshrl.u32 %v2145, 7
        %v2147 = vsub.s32 0, %v2146
        %v2148 = vrot.slane %v2143, %v2147
        %v2151 = vsel %vm1141, %v2138, 0
        %2153 = vmatprep.subr.mxu0 0.0
        %2154 = vmatpush1.msra.mxu0 0.0
        %2155 = vmatprep.subr.mxu0 0.0
        %2156 = vmatpush1.msra.mxu0 0.0
        %2157 = vmatprep.subr.mxu0 0.0
        %2158 = vmatpush1.msra.mxu0 0.0
        %2159 = vmatprep.subr.mxu0 0.0
        %2160 = vmatpush1.msra.mxu0 0.0
        %2161 = vmatprep.subr.mxu0 0.0
        %2162 = vmatpush1.msra.mxu0 0.0
        %2163 = vmatprep.subr.mxu0 0.0
        %2164 = vmatpush1.msra.mxu0 0.0
        %2165 = vmatprep.subr.mxu0 0.0
        %2166 = vmatpush1.msra.mxu0 0.0
        %2167 = vmatprep.subr.mxu0 0.0
        %2168 = vmatpush1.msra.mxu0 0.0
        %2169 = vmatprep.subr.mxu0 0.0
        %2170 = vmatpush1.msra.mxu0 0.0
        %2171 = vmatprep.subr.mxu0 0.0
        %2172 = vmatpush1.msra.mxu0 0.0
        %2173 = vmatprep.subr.mxu0 0.0
        %2174 = vmatpush1.msra.mxu0 0.0
        %2175 = vmatprep.subr.mxu0 0.0
        %2176 = vmatpush1.msra.mxu0 0.0
        %2177 = vmatprep.subr.mxu0 0.0
        %2178 = vmatpush1.msra.mxu0 %v2142
        %2179 = vmatprep.subr.mxu0 0.0
        %2180 = vmatpush1.msra.mxu0 %v2141
        %2181 = vmatprep.subr.mxu0 0.0
        %2182 = vmatpush1.msra.mxu0 %v2140
        %2183 = vmatprep.subr.mxu0 0.0
        %2184 = vmatpush1.msra.mxu0 %v2139
        %2185 = vmatprep.subr.mxu0 0.0
        %2186 = vmatpush2.msra.mxu0 0.0
        %2187 = vmatprep.subr.mxu0 0.0
        %2188 = vmatpush2.msra.mxu0 0.0
        %2189 = vmatprep.subr.mxu0 0.0
        %2190 = vmatpush2.msra.mxu0 0.0
        %2191 = vmatprep.subr.mxu0 0.0
        %2192 = vmatpush2.msra.mxu0 0.0
        %2193 = vmatprep.subr.mxu0 0.0
        %2194 = vmatpush2.msra.mxu0 0.0
        %2195 = vmatprep.subr.mxu0 0.0
        %2196 = vmatpush2.msra.mxu0 0.0
        %2197 = vmatprep.subr.mxu0 0.0
        %2198 = vmatpush2.msra.mxu0 0.0
        %2199 = vmatprep.subr.mxu0 0.0
        %2200 = vmatpush2.msra.mxu0 0.0
        %2201 = vmatprep.subr.mxu0 0.0
        %2202 = vmatpush2.msra.mxu0 0.0
        %2203 = vmatprep.subr.mxu0 0.0
        %2204 = vmatpush2.msra.mxu0 0.0
        %2205 = vmatprep.subr.mxu0 0.0
        %2206 = vmatpush2.msra.mxu0 0.0
        %2207 = vmatprep.subr.mxu0 0.0
        %2208 = vmatpush2.msra.mxu0 0.0
        %2209 = vmatprep.subr.mxu0 0.0
        %2210 = vmatpush2.msra.mxu0 0.0
        %2211 = vmatprep.subr.mxu0 0.0
        %2212 = vmatpush2.msra.mxu0 0.0
        %2213 = vmatprep.subr.mxu0 0.0
        %2214 = vmatpush2.msra.mxu0 0.0
        %2215 = vmatprep.subr.mxu0 0.0
        %2216 = vmatpush2.msra.mxu0 0.0
        %2217 = vmatprep.mubr.f32.mxu0 0.0
        %2218 = vmatmul.mubr.f32.gmra.mxu0 %v2151
        %v2219 = vpop.f32.mrf.mxu0
        %v2220 = vadd.f32 %v2148, %v2219
        %v2221 = vpop.f32.mrf.mxu0
        %2222 = vdwg.mxu0
        %2223 = vst.msk [vmem:[%s425] sm:$0xff] %vm1141, %v2220
        %s2224 = sand.u32 %s295, 1
        %s2225 = scalar_lea.sflag [#allocation6], %s2224
        %s2226 = sand.u32 %s295, 1
        %s2227 = smul.addr %s2226, 8
        %s2228 = scalar_lea.vmem [#allocation5], %s2227
        // Predicated region
        $region69: #{tpu_custom_call.1} parent=63 // pred_check
          %p2229 = pneg %p305
        $region70: #{tpu_custom_call.1} parent=63 // pred_check_branch
          %2231 = sbr.rel (%p2229) target = $region72
        $region71: #{tpu_custom_call.1} parent=63 // pred_region
          %s2233 = ssub.s32 128, 128
          %2234 = vsyncadd %s2225, %s2233
          %s2235 = sadd.s32 %s30, %s29
          %s2236 = smul.addr %s2235, 128
          %s2237 = scalar_lea.hbm %s11, %s2236
          %s2239 = sshll.u32 %s2228, 4
          %s2240 = int_to_ptr.vmem [resolvable:$true] %s2239
          %2242 = dma.vmem_to_hbm [thread:$0]  %s2240, 128, %s2237, %s2225
        $region72: #{tpu_custom_call.1} parent=63 // pred_fallthru
          _
      $region64: #{tpu_custom_call.1} parent=5 // pred_fallthru
        _
      %p2243 = scmp.le.s32.totalorder 2, %s20
      // Predicated region
      $region73: #{tpu_custom_call.1} parent=5 // pred_check
        %p2244 = pneg %p2243
      $region74: #{tpu_custom_call.1} parent=5 // pred_check_branch
        %2246 = sbr.rel (%p2244) target = $region76
      $region75: #{tpu_custom_call.1} parent=5 // pred_region
        %s2247 = ssub.s32 %s20, 2
        // Predicated region
        $region77: #{tpu_custom_call.1} parent=75 // pred_check
          %p2248 = pneg %p311
        $region78: #{tpu_custom_call.1} parent=75 // pred_check_branch
          %2250 = sbr.rel (%p2248) target = $region80
        $region79: #{tpu_custom_call.1} parent=75 // pred_region
          %s2251 = sand.u32 %s296, 1
          %s2252 = scalar_lea.sflag [#allocation6], %s2251
          %s2253 = sand.u32 %s296, 1
          %s2254 = smul.addr %s2253, 8
          %s2255 = scalar_lea.vmem [#allocation5], %s2254
          %2256 = dma.done %s2252, 128
        $region80: #{tpu_custom_call.1} parent=75 // pred_fallthru
          _
      $region76: #{tpu_custom_call.1} parent=5 // pred_fallthru
        _
    $region6: #{tpu_custom_call.1} parent=1 // loop_footer
      %s24 = sadd.s32 1, %s20
    $region7: #{tpu_custom_call.1} parent=1 // loop_footer_branch
      %19 = sbr.rel target = $region3
    $region8: #{tpu_custom_call.1} parent=1 // loop_exit
      _
    %2257 = vsyncpa [#allocation6], 1
    %s2258 = scalar_lea.sflag [#allocation6], 1
    %2259 = vsyncpa %s2258, 1

</llo_original>
